<compile_context>
chip_gen: v7x
topology: tpu7x:2x2x1
jax: 0.10.0
libtpu: 0.0.40
codegen_flags: <defaults>
</compile_context>

<pallas_src>
import functools

import numpy as np
import jax
import jax.numpy as jnp
from jax import lax
from jax.experimental import pallas as pl
from jax.experimental.pallas import tpu as pltpu


def _conv_block_kernel(x_ref, masks_ref, w1_ref, b1_ref, w2_ref, b2_ref,
                       w3_ref, b3_ref, o_ref, *, k, p, h, w, nb, slope,
                       precision):
    """Fused conv1+act, conv2+act, conv3+act for `nb` samples of one grid step.

    Every activation is a (C, H*W) slab (channels on sublanes, flattened spatial on
    lanes).  Each conv layer = K*K circular lane shifts (pltpu.roll, XLU) of the slab,
    masked by tap-validity masks (equivalent to zero padding), concatenated into an
    im2col matrix (K*K*Cin, H*W), then ONE weights-as-LHS MXU matmul
    (Cout, K*K*Cin) @ (K*K*Cin, H*W) plus bias and LeakyReLU.  Lane-dense throughout;
    no padded scratch slabs, no per-step memsets, no transposes.
    """
    hw = h * w

    # Tiny constants: load once per grid step, reused across samples and layers.
    w_mats = (w1_ref[...], w2_ref[...], w3_ref[...])
    biases = (b1_ref[...], b2_ref[...], b3_ref[...])
    taps = [(kh - p, kw - p) for kh in range(k) for kw in range(k)]
    mask_vals = [masks_ref[t] for t in range(k * k)]            # each (1, hw)

    def conv_leaky(act, w_mat, bias):
        # act: (c_in, hw) f32  ->  (c_out, hw) f32
        cols = []
        for t, (dh, dw) in enumerate(taps):
            d = dh * w + dw                       # flattened-lane shift of this tap
            if dh == 0 and dw == 0:
                cols.append(act)                  # center tap: no shift, mask == 1
            else:
                shifted = pltpu.roll(act, (-d) % hw, axis=1)   # shifted[s] = act[s+d]
                cols.append(shifted * mask_vals[t])            # zero-padding mask
        patches = jnp.concatenate(cols, axis=0)   # im2col: (k*k*c_in, hw)
        y = jnp.dot(w_mat, patches,
                    preferred_element_type=jnp.float32,
                    precision=precision) + bias    # bias: (c_out, 1) broadcast
        return jnp.maximum(y, slope * y)           # LeakyReLU (vmul + vmax)

    for i in range(nb):                            # static unroll over block batch
        act = x_ref[i].astype(jnp.float32)         # (c_in, hw), lane-dense
        for w_mat, bias in zip(w_mats, biases):
            act = conv_leaky(act, w_mat, bias)
        o_ref[i] = act.astype(o_ref.dtype)         # lane-dense store


def _pick_block_batch(n):
    """Samples per grid step: amortize per-step overhead for larger batches while
    keeping >= 2 grid steps so both v7x TensorCores (and the pipeline) get work."""
    if n <= 2:
        return 1
    for cand in (8, 4, 2):
        if n % cand == 0 and n // cand >= 2:
            return cand
    return 1


def _padded_tile_bytes(shape, itemsize=4):
    """VMEM footprint of one tile, with last two dims padded to (8, 128)."""
    shape = tuple(int(s) for s in shape)
    if not shape:
        return itemsize
    if len(shape) == 1:
        return ((shape[0] + 127) // 128) * 128 * itemsize
    lane = ((shape[-1] + 127) // 128) * 128
    sub = ((shape[-2] + 7) // 8) * 8
    lead = 1
    for s in shape[:-2]:
        lead *= s
    return lead * sub * lane * itemsize


def reference_forward(x, params, *, kernel_size, padding, negative_slope=0.1):
    """Pure-JAX/XLA reference (lax conv, f32) for correctness checking."""
    p = padding

    def conv(z, w_, b_):
        y = lax.conv_general_dilated(
            z, w_, window_strides=(1, 1), padding=[(p, p), (p, p)],
            dimension_numbers=("NCHW", "OIHW", "NCHW"),
            precision=lax.Precision.HIGHEST)
        return y + b_.reshape(1, -1, 1, 1)

    def leaky(y):
        return jnp.where(y >= 0, y, negative_slope * y)

    y = leaky(conv(x, params["w1"], params["b1"]))
    y = leaky(conv(y, params["w2"], params["b2"]))
    y = leaky(conv(y, params["w3"], params["b3"]))
    return y


def conv_block_forward(x, params, *, kernel_size, padding, negative_slope=0.1,
                       precision=lax.Precision.HIGHEST, block_batch=None):
    """ConvBlock forward.  x: (N, Cin, H, W) float32 (NCHW, PyTorch layout).

    params: PyTorch-layout tensors:
      w1: (Cout, Cin, K, K), b1: (Cout,), w2/w3: (Cout, Cout, K, K), b2/b3: (Cout,).
    Returns (N, Cout, H, W) for the "same"-conv configuration (2*padding == K-1).
    """
    n, c_in, h, w = x.shape
    k, p = kernel_size, padding
    c_out = params["w1"].shape[0]
    assert params["w1"].shape == (c_out, c_in, k, k)
    assert params["w2"].shape == (c_out, c_out, k, k)
    assert params["w3"].shape == (c_out, c_out, k, k)

    if 2 * p != k - 1:
        # TODO(synk): non-"same" convs change the spatial size every layer, which
        # breaks the fused constant-lane-shift scheme; fall back to the XLA reference.
        return reference_forward(x, params, kernel_size=k, padding=p,
                                 negative_slope=negative_slope)

    hw = h * w
    nb = block_batch if block_batch is not None else _pick_block_batch(n)
    assert n % nb == 0, (n, nb)

    # Free reshape: NCHW -> (N, Cin, H*W).  No wrapper-side transpose/pad is
    # materialized; x is read from HBM exactly once, output written once.
    x_flat = x.reshape(n, c_in, hw)

    # Weights -> (Cout, K*K*Cin) with columns ordered (kh, kw, cin) matching the
    # kernel's im2col row order; biases -> (Cout, 1).  Tiny arrays.
    def prep_w(w_):
        o, i = int(w_.shape[0]), int(w_.shape[1])
        return jnp.transpose(w_, (0, 2, 3, 1)).reshape(o, k * k * i).astype(jnp.float32)

    w1m, w2m, w3m = prep_w(params["w1"]), prep_w(params["w2"]), prep_w(params["w3"])
    b1m = params["b1"].reshape(c_out, 1).astype(jnp.float32)
    b2m = params["b2"].reshape(c_out, 1).astype(jnp.float32)
    b3m = params["b3"].reshape(c_out, 1).astype(jnp.float32)

    # Tap-validity masks (host-side compile-time constants).  mask[t, 0, s] == 1 iff
    # output pixel s=(hh,ww) reads an in-bounds input pixel for tap t=(kh,kw); a 0
    # entry is exactly the zero-padding contribution.
    masks_np = np.zeros((k * k, 1, hw), np.float32)
    hh = np.arange(h)[:, None]
    ww = np.arange(w)[None, :]
    t = 0
    for kh in range(k):
        for kw in range(k):
            dh, dw = kh - p, kw - p
            valid = ((hh + dh >= 0) & (hh + dh < h) &
                     (ww + dw >= 0) & (ww + dw < w))
            masks_np[t, 0, :] = valid.astype(np.float32).reshape(hw)
            t += 1
    masks = jnp.asarray(masks_np)

    kernel = functools.partial(_conv_block_kernel, k=k, p=p, h=h, w=w, nb=nb,
                               slope=negative_slope, precision=precision)

    def const_spec(arr):
        nd = arr.ndim
        # Constant index map -> the pipeline fetches these once and keeps them
        # resident across the whole grid.
        return pl.BlockSpec(arr.shape, lambda i, _nd=nd: (0,) * _nd)

    in_specs = [
        pl.BlockSpec((nb, c_in, hw), lambda i: (i, 0, 0)),     # lane-dense x slab
        const_spec(masks),
        const_spec(w1m), const_spec(b1m),
        const_spec(w2m), const_spec(b2m),
        const_spec(w3m), const_spec(b3m),
    ]
    out_spec = pl.BlockSpec((nb, c_out, hw), lambda i: (i, 0, 0))

    flops = 2 * n * k * k * hw * (c_in * c_out + 2 * c_out * c_out)
    bytes_accessed = 4 * (x_flat.size + n * c_out * hw + masks.size
                          + w1m.size + w2m.size + w3m.size + 3 * c_out)
    cost = pl.CostEstimate(flops=int(flops), transcendentals=0,
                           bytes_accessed=int(bytes_accessed))

    # Generation-aware VMEM budget: double-buffered I/O tiles + resident constants,
    # accounted at their (8,128)-padded footprint, capped below the VMEM of the chip
    # we are compiling for (~64 MiB on v7x, 128 MiB on v5e/v6e).
    per_step = (2 * (_padded_tile_bytes((nb, c_in, hw))
                     + _padded_tile_bytes((nb, c_out, hw)))
                + 2 * (_padded_tile_bytes(masks.shape)
                       + _padded_tile_bytes(w1m.shape)
                       + _padded_tile_bytes(w2m.shape)
                       + _padded_tile_bytes(w3m.shape)
                       + 3 * _padded_tile_bytes((c_out, 1))))
    try:
        vmem_cap = int(pltpu.get_tpu_info().vmem_capacity_bytes)
    except Exception:  # conservative fallback: assume v7x-sized VMEM
        vmem_cap = 64 * 1024 * 1024
    vmem_limit = int(min(max(4 * per_step, 32 * 1024 * 1024), int(0.85 * vmem_cap)))

    out_flat = pl.pallas_call(
        kernel,
        out_shape=jax.ShapeDtypeStruct((n, c_out, hw), x.dtype),
        grid=(n // nb,),
        in_specs=in_specs,
        out_specs=out_spec,
        compiler_params=pltpu.CompilerParams(
            dimension_semantics=("parallel",),   # batch steps split across v7x's 2 TCs
            vmem_limit_bytes=vmem_limit),
        cost_estimate=cost,
    )(x_flat, masks, w1m, b1m, w2m, b2m, w3m, b3m)

    # Free reshape back to NCHW.
    return out_flat.reshape(n, c_out, h, w)


if __name__ == "__main__":
    key = jax.random.PRNGKey(0)
    n, c_in, c_out, h, w = 2, 4, 8, 16, 16
    k, p = 3, 1

    ks = jax.random.split(key, 7)
    x = jax.random.normal(ks[0], (n, c_in, h, w), dtype=jnp.float32)

    def w_init(rng, o, i):
        return jax.random.normal(rng, (o, i, k, k), jnp.float32) / jnp.sqrt(i * k * k)

    params = {
        "w1": w_init(ks[1], c_out, c_in),
        "b1": 0.1 * jax.random.normal(ks[2], (c_out,), jnp.float32),
        "w2": w_init(ks[3], c_out, c_out),
        "b2": 0.1 * jax.random.normal(ks[4], (c_out,), jnp.float32),
        "w3": w_init(ks[5], c_out, c_out),
        "b3": 0.1 * jax.random.normal(ks[6], (c_out,), jnp.float32),
    }

    out = conv_block_forward(x, params, kernel_size=k, padding=p)
    out = jax.block_until_ready(out)

    ref = reference_forward(x, params, kernel_size=k, padding=p)
    assert out.shape == ref.shape == (n, c_out, h, w), (out.shape, ref.shape)
    max_err = float(jnp.max(jnp.abs(out - ref)))
    assert jnp.allclose(out, ref, atol=1e-4, rtol=1e-4), f"mismatch vs reference: {max_err}"

    print("KERNEL_OK")
</pallas_src>

<mosaic_0001>
module attributes {stable_mosaic.version = 11 : i64} {
  func.func @_conv_block_kernel(%arg0: i32, %arg1: memref<1x4x256xf32, #tpu.memory_space<vmem>>, %arg2: memref<9x1x256xf32, #tpu.memory_space<vmem>>, %arg3: memref<8x36xf32, #tpu.memory_space<vmem>>, %arg4: memref<8x1xf32, #tpu.memory_space<vmem>>, %arg5: memref<8x72xf32, #tpu.memory_space<vmem>>, %arg6: memref<8x1xf32, #tpu.memory_space<vmem>>, %arg7: memref<8x72xf32, #tpu.memory_space<vmem>>, %arg8: memref<8x1xf32, #tpu.memory_space<vmem>>, %arg9: memref<1x8x256xf32, #tpu.memory_space<vmem>>) attributes {dimension_semantics = [#tpu.dimension_semantics<parallel>], iteration_bounds = array<i64: 2>, scalar_prefetch = 0 : i64, scratch_operands = 0 : i64, tpu.core_type = #tpu.core_type<tc>, window_params = [{transform_indices = @transform_0, window_bounds = array<i64: 1, 4, 256>}, {pipeline_mode = #tpu.pipeline_mode<synchronous>, transform_indices = @transform_1, window_bounds = array<i64: 9, 1, 256>}, {pipeline_mode = #tpu.pipeline_mode<synchronous>, transform_indices = @transform_2, window_bounds = array<i64: 8, 36>}, {pipeline_mode = #tpu.pipeline_mode<synchronous>, transform_indices = @transform_3, window_bounds = array<i64: 8, 1>}, {pipeline_mode = #tpu.pipeline_mode<synchronous>, transform_indices = @transform_4, window_bounds = array<i64: 8, 72>}, {pipeline_mode = #tpu.pipeline_mode<synchronous>, transform_indices = @transform_5, window_bounds = array<i64: 8, 1>}, {pipeline_mode = #tpu.pipeline_mode<synchronous>, transform_indices = @transform_6, window_bounds = array<i64: 8, 72>}, {pipeline_mode = #tpu.pipeline_mode<synchronous>, transform_indices = @transform_7, window_bounds = array<i64: 8, 1>}, {transform_indices = @transform_8, window_bounds = array<i64: 1, 8, 256>}]} {
    %c0 = arith.constant 0 : index
    %c0_0 = arith.constant 0 : index
    %0 = vector.load %arg3[%c0, %c0_0] : memref<8x36xf32, #tpu.memory_space<vmem>>, vector<8x36xf32>
    %c0_1 = arith.constant 0 : index
    %c0_2 = arith.constant 0 : index
    %1 = vector.load %arg5[%c0_1, %c0_2] : memref<8x72xf32, #tpu.memory_space<vmem>>, vector<8x72xf32>
    %c0_3 = arith.constant 0 : index
    %c0_4 = arith.constant 0 : index
    %2 = vector.load %arg7[%c0_3, %c0_4] : memref<8x72xf32, #tpu.memory_space<vmem>>, vector<8x72xf32>
    %c0_5 = arith.constant 0 : index
    %c0_6 = arith.constant 0 : index
    %3 = vector.load %arg4[%c0_5, %c0_6] : memref<8x1xf32, #tpu.memory_space<vmem>>, vector<8x1xf32>
    %c0_7 = arith.constant 0 : index
    %c0_8 = arith.constant 0 : index
    %4 = vector.load %arg6[%c0_7, %c0_8] : memref<8x1xf32, #tpu.memory_space<vmem>>, vector<8x1xf32>
    %c0_9 = arith.constant 0 : index
    %c0_10 = arith.constant 0 : index
    %5 = vector.load %arg8[%c0_9, %c0_10] : memref<8x1xf32, #tpu.memory_space<vmem>>, vector<8x1xf32>
    %c0_11 = arith.constant 0 : index
    %c0_12 = arith.constant 0 : index
    %c0_13 = arith.constant 0 : index
    %6 = vector.load %arg2[%c0_11, %c0_12, %c0_13] : memref<9x1x256xf32, #tpu.memory_space<vmem>>, vector<1x1x256xf32>
    %7 = vector.shape_cast %6 : vector<1x1x256xf32> to vector<1x256xf32>
    %c1 = arith.constant 1 : index
    %c0_14 = arith.constant 0 : index
    %c0_15 = arith.constant 0 : index
    %8 = vector.load %arg2[%c1, %c0_14, %c0_15] : memref<9x1x256xf32, #tpu.memory_space<vmem>>, vector<1x1x256xf32>
    %9 = vector.shape_cast %8 : vector<1x1x256xf32> to vector<1x256xf32>
    %c2 = arith.constant 2 : index
    %c0_16 = arith.constant 0 : index
    %c0_17 = arith.constant 0 : index
    %10 = vector.load %arg2[%c2, %c0_16, %c0_17] : memref<9x1x256xf32, #tpu.memory_space<vmem>>, vector<1x1x256xf32>
    %11 = vector.shape_cast %10 : vector<1x1x256xf32> to vector<1x256xf32>
    %c3 = arith.constant 3 : index
    %c0_18 = arith.constant 0 : index
    %c0_19 = arith.constant 0 : index
    %12 = vector.load %arg2[%c3, %c0_18, %c0_19] : memref<9x1x256xf32, #tpu.memory_space<vmem>>, vector<1x1x256xf32>
    %13 = vector.shape_cast %12 : vector<1x1x256xf32> to vector<1x256xf32>
    %c5 = arith.constant 5 : index
    %c0_20 = arith.constant 0 : index
    %c0_21 = arith.constant 0 : index
    %14 = vector.load %arg2[%c5, %c0_20, %c0_21] : memref<9x1x256xf32, #tpu.memory_space<vmem>>, vector<1x1x256xf32>
    %15 = vector.shape_cast %14 : vector<1x1x256xf32> to vector<1x256xf32>
    %c6 = arith.constant 6 : index
    %c0_22 = arith.constant 0 : index
    %c0_23 = arith.constant 0 : index
    %16 = vector.load %arg2[%c6, %c0_22, %c0_23] : memref<9x1x256xf32, #tpu.memory_space<vmem>>, vector<1x1x256xf32>
    %17 = vector.shape_cast %16 : vector<1x1x256xf32> to vector<1x256xf32>
    %c7 = arith.constant 7 : index
    %c0_24 = arith.constant 0 : index
    %c0_25 = arith.constant 0 : index
    %18 = vector.load %arg2[%c7, %c0_24, %c0_25] : memref<9x1x256xf32, #tpu.memory_space<vmem>>, vector<1x1x256xf32>
    %19 = vector.shape_cast %18 : vector<1x1x256xf32> to vector<1x256xf32>
    %c8 = arith.constant 8 : index
    %c0_26 = arith.constant 0 : index
    %c0_27 = arith.constant 0 : index
    %20 = vector.load %arg2[%c8, %c0_26, %c0_27] : memref<9x1x256xf32, #tpu.memory_space<vmem>>, vector<1x1x256xf32>
    %21 = vector.shape_cast %20 : vector<1x1x256xf32> to vector<1x256xf32>
    %c0_28 = arith.constant 0 : index
    %c0_29 = arith.constant 0 : index
    %c0_30 = arith.constant 0 : index
    %22 = vector.load %arg1[%c0_28, %c0_29, %c0_30] : memref<1x4x256xf32, #tpu.memory_space<vmem>>, vector<1x4x256xf32>
    %23 = vector.shape_cast %22 : vector<1x4x256xf32> to vector<4x256xf32>
    %c17_i32 = arith.constant 17 : i32
    %24 = tpu.dynamic_rotate %23 by %c17_i32 dim 1 : vector<4x256xf32>, i32 -> vector<4x256xf32>
    %25 = vector.broadcast %7 : vector<1x256xf32> to vector<4x256xf32>
    %26 = arith.mulf %24, %25 : vector<4x256xf32>
    %c16_i32 = arith.constant 16 : i32
    %27 = tpu.dynamic_rotate %23 by %c16_i32 dim 1 : vector<4x256xf32>, i32 -> vector<4x256xf32>
    %28 = vector.broadcast %9 : vector<1x256xf32> to vector<4x256xf32>
    %29 = arith.mulf %27, %28 : vector<4x256xf32>
    %c15_i32 = arith.constant 15 : i32
    %30 = tpu.dynamic_rotate %23 by %c15_i32 dim 1 : vector<4x256xf32>, i32 -> vector<4x256xf32>
    %31 = vector.broadcast %11 : vector<1x256xf32> to vector<4x256xf32>
    %32 = arith.mulf %30, %31 : vector<4x256xf32>
    %c1_i32 = arith.constant 1 : i32
    %33 = tpu.dynamic_rotate %23 by %c1_i32 dim 1 : vector<4x256xf32>, i32 -> vector<4x256xf32>
    %34 = vector.broadcast %13 : vector<1x256xf32> to vector<4x256xf32>
    %35 = arith.mulf %33, %34 : vector<4x256xf32>
    %c255_i32 = arith.constant 255 : i32
    %36 = tpu.dynamic_rotate %23 by %c255_i32 dim 1 : vector<4x256xf32>, i32 -> vector<4x256xf32>
    %37 = vector.broadcast %15 : vector<1x256xf32> to vector<4x256xf32>
    %38 = arith.mulf %36, %37 : vector<4x256xf32>
    %c241_i32 = arith.constant 241 : i32
    %39 = tpu.dynamic_rotate %23 by %c241_i32 dim 1 : vector<4x256xf32>, i32 -> vector<4x256xf32>
    %40 = vector.broadcast %17 : vector<1x256xf32> to vector<4x256xf32>
    %41 = arith.mulf %39, %40 : vector<4x256xf32>
    %c240_i32 = arith.constant 240 : i32
    %42 = tpu.dynamic_rotate %23 by %c240_i32 dim 1 : vector<4x256xf32>, i32 -> vector<4x256xf32>
    %43 = vector.broadcast %19 : vector<1x256xf32> to vector<4x256xf32>
    %44 = arith.mulf %42, %43 : vector<4x256xf32>
    %c239_i32 = arith.constant 239 : i32
    %45 = tpu.dynamic_rotate %23 by %c239_i32 dim 1 : vector<4x256xf32>, i32 -> vector<4x256xf32>
    %46 = vector.broadcast %21 : vector<1x256xf32> to vector<4x256xf32>
    %47 = arith.mulf %45, %46 : vector<4x256xf32>
    %48 = tpu.concatenate %26, %29, %32, %35, %23, %38, %41, %44, %47 in 0 : vector<4x256xf32>, vector<4x256xf32>, vector<4x256xf32>, vector<4x256xf32>, vector<4x256xf32>, vector<4x256xf32>, vector<4x256xf32>, vector<4x256xf32>, vector<4x256xf32> -> vector<36x256xf32>
    %cst = arith.constant dense<0.000000e+00> : vector<8x256xf32>
    %49 = tpu.matmul %0, %48, %cst {dimension_numbers = #tpu.dot_dimension_numbers<[1], [0], [0], [1], [0, 0, 1, 1], [], []>, precision = #tpu.contract_precision<fp32>} : vector<8x36xf32>, vector<36x256xf32>, vector<8x256xf32> -> vector<8x256xf32>
    %50 = vector.broadcast %3 : vector<8x1xf32> to vector<8x256xf32>
    %51 = arith.addf %49, %50 : vector<8x256xf32>
    %cst_31 = arith.constant 1.000000e-01 : f32
    %52 = vector.broadcast %cst_31 : f32 to vector<8x256xf32>
    %53 = arith.mulf %52, %51 : vector<8x256xf32>
    %54 = arith.maximumf %51, %53 : vector<8x256xf32>
    %c17_i32_32 = arith.constant 17 : i32
    %55 = tpu.dynamic_rotate %54 by %c17_i32_32 dim 1 : vector<8x256xf32>, i32 -> vector<8x256xf32>
    %56 = vector.broadcast %7 : vector<1x256xf32> to vector<8x256xf32>
    %57 = arith.mulf %55, %56 : vector<8x256xf32>
    %c16_i32_33 = arith.constant 16 : i32
    %58 = tpu.dynamic_rotate %54 by %c16_i32_33 dim 1 : vector<8x256xf32>, i32 -> vector<8x256xf32>
    %59 = vector.broadcast %9 : vector<1x256xf32> to vector<8x256xf32>
    %60 = arith.mulf %58, %59 : vector<8x256xf32>
    %c15_i32_34 = arith.constant 15 : i32
    %61 = tpu.dynamic_rotate %54 by %c15_i32_34 dim 1 : vector<8x256xf32>, i32 -> vector<8x256xf32>
    %62 = vector.broadcast %11 : vector<1x256xf32> to vector<8x256xf32>
    %63 = arith.mulf %61, %62 : vector<8x256xf32>
    %c1_i32_35 = arith.constant 1 : i32
    %64 = tpu.dynamic_rotate %54 by %c1_i32_35 dim 1 : vector<8x256xf32>, i32 -> vector<8x256xf32>
    %65 = vector.broadcast %13 : vector<1x256xf32> to vector<8x256xf32>
    %66 = arith.mulf %64, %65 : vector<8x256xf32>
    %c255_i32_36 = arith.constant 255 : i32
    %67 = tpu.dynamic_rotate %54 by %c255_i32_36 dim 1 : vector<8x256xf32>, i32 -> vector<8x256xf32>
    %68 = vector.broadcast %15 : vector<1x256xf32> to vector<8x256xf32>
    %69 = arith.mulf %67, %68 : vector<8x256xf32>
    %c241_i32_37 = arith.constant 241 : i32
    %70 = tpu.dynamic_rotate %54 by %c241_i32_37 dim 1 : vector<8x256xf32>, i32 -> vector<8x256xf32>
    %71 = vector.broadcast %17 : vector<1x256xf32> to vector<8x256xf32>
    %72 = arith.mulf %70, %71 : vector<8x256xf32>
    %c240_i32_38 = arith.constant 240 : i32
    %73 = tpu.dynamic_rotate %54 by %c240_i32_38 dim 1 : vector<8x256xf32>, i32 -> vector<8x256xf32>
    %74 = vector.broadcast %19 : vector<1x256xf32> to vector<8x256xf32>
    %75 = arith.mulf %73, %74 : vector<8x256xf32>
    %c239_i32_39 = arith.constant 239 : i32
    %76 = tpu.dynamic_rotate %54 by %c239_i32_39 dim 1 : vector<8x256xf32>, i32 -> vector<8x256xf32>
    %77 = vector.broadcast %21 : vector<1x256xf32> to vector<8x256xf32>
    %78 = arith.mulf %76, %77 : vector<8x256xf32>
    %79 = tpu.concatenate %57, %60, %63, %66, %54, %69, %72, %75, %78 in 0 : vector<8x256xf32>, vector<8x256xf32>, vector<8x256xf32>, vector<8x256xf32>, vector<8x256xf32>, vector<8x256xf32>, vector<8x256xf32>, vector<8x256xf32>, vector<8x256xf32> -> vector<72x256xf32>
    %cst_40 = arith.constant dense<0.000000e+00> : vector<8x256xf32>
    %80 = tpu.matmul %1, %79, %cst_40 {dimension_numbers = #tpu.dot_dimension_numbers<[1], [0], [0], [1], [0, 0, 1, 1], [], []>, precision = #tpu.contract_precision<fp32>} : vector<8x72xf32>, vector<72x256xf32>, vector<8x256xf32> -> vector<8x256xf32>
    %81 = vector.broadcast %4 : vector<8x1xf32> to vector<8x256xf32>
    %82 = arith.addf %80, %81 : vector<8x256xf32>
    %cst_41 = arith.constant 1.000000e-01 : f32
    %83 = vector.broadcast %cst_41 : f32 to vector<8x256xf32>
    %84 = arith.mulf %83, %82 : vector<8x256xf32>
    %85 = arith.maximumf %82, %84 : vector<8x256xf32>
    %c17_i32_42 = arith.constant 17 : i32
    %86 = tpu.dynamic_rotate %85 by %c17_i32_42 dim 1 : vector<8x256xf32>, i32 -> vector<8x256xf32>
    %87 = vector.broadcast %7 : vector<1x256xf32> to vector<8x256xf32>
    %88 = arith.mulf %86, %87 : vector<8x256xf32>
    %c16_i32_43 = arith.constant 16 : i32
    %89 = tpu.dynamic_rotate %85 by %c16_i32_43 dim 1 : vector<8x256xf32>, i32 -> vector<8x256xf32>
    %90 = vector.broadcast %9 : vector<1x256xf32> to vector<8x256xf32>
    %91 = arith.mulf %89, %90 : vector<8x256xf32>
    %c15_i32_44 = arith.constant 15 : i32
    %92 = tpu.dynamic_rotate %85 by %c15_i32_44 dim 1 : vector<8x256xf32>, i32 -> vector<8x256xf32>
    %93 = vector.broadcast %11 : vector<1x256xf32> to vector<8x256xf32>
    %94 = arith.mulf %92, %93 : vector<8x256xf32>
    %c1_i32_45 = arith.constant 1 : i32
    %95 = tpu.dynamic_rotate %85 by %c1_i32_45 dim 1 : vector<8x256xf32>, i32 -> vector<8x256xf32>
    %96 = vector.broadcast %13 : vector<1x256xf32> to vector<8x256xf32>
    %97 = arith.mulf %95, %96 : vector<8x256xf32>
    %c255_i32_46 = arith.constant 255 : i32
    %98 = tpu.dynamic_rotate %85 by %c255_i32_46 dim 1 : vector<8x256xf32>, i32 -> vector<8x256xf32>
    %99 = vector.broadcast %15 : vector<1x256xf32> to vector<8x256xf32>
    %100 = arith.mulf %98, %99 : vector<8x256xf32>
    %c241_i32_47 = arith.constant 241 : i32
    %101 = tpu.dynamic_rotate %85 by %c241_i32_47 dim 1 : vector<8x256xf32>, i32 -> vector<8x256xf32>
    %102 = vector.broadcast %17 : vector<1x256xf32> to vector<8x256xf32>
    %103 = arith.mulf %101, %102 : vector<8x256xf32>
    %c240_i32_48 = arith.constant 240 : i32
    %104 = tpu.dynamic_rotate %85 by %c240_i32_48 dim 1 : vector<8x256xf32>, i32 -> vector<8x256xf32>
    %105 = vector.broadcast %19 : vector<1x256xf32> to vector<8x256xf32>
    %106 = arith.mulf %104, %105 : vector<8x256xf32>
    %c239_i32_49 = arith.constant 239 : i32
    %107 = tpu.dynamic_rotate %85 by %c239_i32_49 dim 1 : vector<8x256xf32>, i32 -> vector<8x256xf32>
    %108 = vector.broadcast %21 : vector<1x256xf32> to vector<8x256xf32>
    %109 = arith.mulf %107, %108 : vector<8x256xf32>
    %110 = tpu.concatenate %88, %91, %94, %97, %85, %100, %103, %106, %109 in 0 : vector<8x256xf32>, vector<8x256xf32>, vector<8x256xf32>, vector<8x256xf32>, vector<8x256xf32>, vector<8x256xf32>, vector<8x256xf32>, vector<8x256xf32>, vector<8x256xf32> -> vector<72x256xf32>
    %cst_50 = arith.constant dense<0.000000e+00> : vector<8x256xf32>
    %111 = tpu.matmul %2, %110, %cst_50 {dimension_numbers = #tpu.dot_dimension_numbers<[1], [0], [0], [1], [0, 0, 1, 1], [], []>, precision = #tpu.contract_precision<fp32>} : vector<8x72xf32>, vector<72x256xf32>, vector<8x256xf32> -> vector<8x256xf32>
    %112 = vector.broadcast %5 : vector<8x1xf32> to vector<8x256xf32>
    %113 = arith.addf %111, %112 : vector<8x256xf32>
    %cst_51 = arith.constant 1.000000e-01 : f32
    %114 = vector.broadcast %cst_51 : f32 to vector<8x256xf32>
    %115 = arith.mulf %114, %113 : vector<8x256xf32>
    %116 = arith.maximumf %113, %115 : vector<8x256xf32>
    %c0_52 = arith.constant 0 : index
    %c0_53 = arith.constant 0 : index
    %c0_54 = arith.constant 0 : index
    %117 = vector.load %arg9[%c0_52, %c0_53, %c0_54] : memref<1x8x256xf32, #tpu.memory_space<vmem>>, vector<1x8x256xf32>
    %118 = vector.shape_cast %117 : vector<1x8x256xf32> to vector<8x256xf32>
    %119 = vector.shape_cast %116 : vector<8x256xf32> to vector<1x8x256xf32>
    tpu.vector_store %arg9[%c0_52, %c0_53, %c0_54], %119 {strides = array<i32>} : memref<1x8x256xf32, #tpu.memory_space<vmem>>, vector<1x8x256xf32>,
    return
  }
  func.func @transform_0(%arg0: i32) -> (i32, i32, i32) {
    %c0_i32 = arith.constant 0 : i32
    %c0_i32_0 = arith.constant 0 : i32
    %c0_i32_1 = arith.constant 0 : i32
    return %arg0, %c0_i32, %c0_i32_0 : i32, i32, i32
  }
  func.func @transform_1(%arg0: i32) -> (i32, i32, i32) {
    %c0_i32 = arith.constant 0 : i32
    %c0_i32_0 = arith.constant 0 : i32
    %c0_i32_1 = arith.constant 0 : i32
    %c0_i32_2 = arith.constant 0 : i32
    return %c0_i32, %c0_i32_0, %c0_i32_1 : i32, i32, i32
  }
  func.func @transform_2(%arg0: i32) -> (i32, i32) {
    %c0_i32 = arith.constant 0 : i32
    %c0_i32_0 = arith.constant 0 : i32
    %c0_i32_1 = arith.constant 0 : i32
    return %c0_i32, %c0_i32_0 : i32, i32
  }
  func.func @transform_3(%arg0: i32) -> (i32, i32) {
    %c0_i32 = arith.constant 0 : i32
    %c0_i32_0 = arith.constant 0 : i32
    %c0_i32_1 = arith.constant 0 : i32
    return %c0_i32, %c0_i32_0 : i32, i32
  }
  func.func @transform_4(%arg0: i32) -> (i32, i32) {
    %c0_i32 = arith.constant 0 : i32
    %c0_i32_0 = arith.constant 0 : i32
    %c0_i32_1 = arith.constant 0 : i32
    return %c0_i32, %c0_i32_0 : i32, i32
  }
  func.func @transform_5(%arg0: i32) -> (i32, i32) {
    %c0_i32 = arith.constant 0 : i32
    %c0_i32_0 = arith.constant 0 : i32
    %c0_i32_1 = arith.constant 0 : i32
    return %c0_i32, %c0_i32_0 : i32, i32
  }
  func.func @transform_6(%arg0: i32) -> (i32, i32) {
    %c0_i32 = arith.constant 0 : i32
    %c0_i32_0 = arith.constant 0 : i32
    %c0_i32_1 = arith.constant 0 : i32
    return %c0_i32, %c0_i32_0 : i32, i32
  }
  func.func @transform_7(%arg0: i32) -> (i32, i32) {
    %c0_i32 = arith.constant 0 : i32
    %c0_i32_0 = arith.constant 0 : i32
    %c0_i32_1 = arith.constant 0 : i32
    return %c0_i32, %c0_i32_0 : i32, i32
  }
  func.func @transform_8(%arg0: i32) -> (i32, i32, i32) {
    %c0_i32 = arith.constant 0 : i32
    %c0_i32_0 = arith.constant 0 : i32
    %c0_i32_1 = arith.constant 0 : i32
    return %arg0, %c0_i32, %c0_i32_0 : i32, i32, i32
  }
}

</mosaic_0001>

<llo_original>
// kernel: tpu_custom_call.1
$region0: #{tpu_custom_call.1}
  #allocation0 [shape = 'u32[]', space=smem, size = 0x4, offset = 0x4, fixed_abs, tag = 'smem constant byte address 0x4 - core index']
  #allocation1 [shape = 'u32[144,128]{1,0:T(1,128)}', space=vmem, size = 0x12000, scoped, tag = 'internal scratch']
  %s0 = inlined_call_operand.hbm [shape: f32[2,4,256], index: 0, kind: input, shape index: {}]
  %s1 = inlined_call_operand.vmem [shape: f32[9,1,256], index: 1, kind: input, shape index: {}]
  %s2 = inlined_call_operand.vmem [shape: f32[8,36], index: 2, kind: input, shape index: {}]
  %s3 = inlined_call_operand.vmem [shape: f32[8,1], index: 3, kind: input, shape index: {}]
  %s4 = inlined_call_operand.vmem [shape: f32[8,72], index: 4, kind: input, shape index: {}]
  %s5 = inlined_call_operand.vmem [shape: f32[8,1], index: 5, kind: input, shape index: {}]
  %s6 = inlined_call_operand.vmem [shape: f32[8,72], index: 6, kind: input, shape index: {}]
  %s7 = inlined_call_operand.vmem [shape: f32[8,1], index: 7, kind: input, shape index: {}]
  %s8 = inlined_call_operand.hbm [shape: f32[2,8,256], index: 8, kind: output, shape index: {}]
  %s9 = sld [smem:[#allocation0]]
  $region69: #{tpu_custom_call.1} parent=0
    _
  %s11 = ssub.s32 1, %s9
  %s12 = scalar_select 0, %s11, %s9
  $region1: #{tpu_custom_call.1} parent=0
    #allocation2 [shape = 'u8[8192]{0}', space=vmem, size = 0x2000, scoped, tag = 'input window, operand 0']
    #allocation3 [shape = 's32[2]{0}', space=sflag, size = 0x8, scoped, tag = 'scoped memory for tpu_custom_call.1']
    #allocation4 [shape = 's32[2]{0}', space=sflag, size = 0x8, scoped, tag = 'scoped memory for tpu_custom_call.1']
    #allocation5 [shape = 'u8[16384]{0}', space=vmem, size = 0x4000, scoped, tag = 'output window, operand 0']
    %13 = vsyncpa [#allocation3], 0
    %s14 = scalar_lea.sflag [#allocation3], 1
    %15 = vsyncpa %s14, 0
    %16 = vsyncpa [#allocation4], 0
    %s17 = scalar_lea.sflag [#allocation4], 1
    %18 = vsyncpa %s17, 0
    loop: start=0, step=1, limit=4
    $region2: #{tpu_custom_call.1} parent=1 // loop_pre_header
      _
    $region3: #{tpu_custom_call.1} parent=1 // loop_header
      %s20 = sphi 0, %s24
      %p21 = scmp.ge.s32.totalorder %s20, 4
      %s30 = sphi 0, %s32
      %s33 = sphi 0, %s30
      %s34 = sphi 0, %s33
      %s50 = sphi 0, %s34
      %s54 = sphi 0, %s54
      %s56 = sphi 0, %s54
      %s57 = sphi 0, %s56
      %s71 = sphi 0, %s57
      %s75 = sphi 0, %s75
      %s77 = sphi 0, %s75
      %s78 = sphi 0, %s77
      %s92 = sphi 0, %s78
      %s96 = sphi 0, %s96
      %s98 = sphi 0, %s96
      %s99 = sphi 0, %s98
      %s113 = sphi 0, %s99
      %s117 = sphi 0, %s117
      %s119 = sphi 0, %s117
      %s120 = sphi 0, %s119
      %s134 = sphi 0, %s120
      %s138 = sphi 0, %s138
      %s140 = sphi 0, %s138
      %s141 = sphi 0, %s140
      %s155 = sphi 0, %s141
      %s159 = sphi 0, %s159
      %s161 = sphi 0, %s159
      %s162 = sphi 0, %s161
      %s176 = sphi 0, %s162
      %s180 = sphi 0, %s180
      %s182 = sphi 0, %s180
      %s183 = sphi 0, %s182
      %s197 = sphi 0, %s183
      %s203 = sphi 0, %s205
      %s206 = sphi 0, %s203
      %s207 = sphi 0, %s206
      %s223 = sphi 0, %s207
    $region4: #{tpu_custom_call.1} parent=1 // loop_header_branch
      %23 = sbr.rel (%p21) target = $region8
    $region5: #{tpu_custom_call.1} parent=1 // loop_body
      %s25 = ssub.s32 %s20, 1
      %s26 = ssub.s32 %s20, 2
      %s27 = sadd.s32 %s20, 1
      %s28 = ssub.s32 %s20, %s27
      %p29 = scmp.eq.s32.totalorder %s28, 0
      %s31 = sadd.s32 %s30, 1
      %s32 = scalar_select %p29, %s30, %s31
      %p35 = pneg %p29
      %p36 = scmp.eq.s32.totalorder %s20, 1
      %p37 = por %p35, %p36
      %p38 = scmp.ne.s32.totalorder %s30, %s33
      %p39 = scmp.eq.s32.totalorder %s20, 0
      %p40 = por %p38, %p39
      %p41 = scmp.ne.s32.totalorder %s30, %s33
      %p42 = scmp.eq.s32.totalorder %s25, 1
      %p43 = por %p41, %p42
      %p44 = scmp.ne.s32.totalorder %s33, %s34
      %p45 = scmp.eq.s32.totalorder %s25, 0
      %p46 = por %p44, %p45
      %p47 = scmp.ne.s32.totalorder %s33, %s34
      %p48 = scmp.eq.s32.totalorder %s26, 1
      %p49 = por %p47, %p48
      %p51 = scmp.ne.s32.totalorder %s34, %s50
      %p52 = scmp.eq.s32.totalorder %s26, 0
      %p53 = por %p51, %p52
      %s55 = sadd.s32 %s54, 1
      %p58 = scmp.eq.s32.totalorder %s20, 1
      %p59 = scmp.ne.s32.totalorder %s54, %s56
      %p60 = scmp.eq.s32.totalorder %s20, 0
      %p61 = por %p59, %p60
      %p62 = scmp.ne.s32.totalorder %s54, %s56
      %p63 = scmp.eq.s32.totalorder %s25, 1
      %p64 = por %p62, %p63
      %p65 = scmp.ne.s32.totalorder %s56, %s57
      %p66 = scmp.eq.s32.totalorder %s25, 0
      %p67 = por %p65, %p66
      %p68 = scmp.ne.s32.totalorder %s56, %s57
      %p69 = scmp.eq.s32.totalorder %s26, 1
      %p70 = por %p68, %p69
      %p72 = scmp.ne.s32.totalorder %s57, %s71
      %p73 = scmp.eq.s32.totalorder %s26, 0
      %p74 = por %p72, %p73
      %s76 = sadd.s32 %s75, 1
      %p79 = scmp.eq.s32.totalorder %s20, 1
      %p80 = scmp.ne.s32.totalorder %s75, %s77
      %p81 = scmp.eq.s32.totalorder %s20, 0
      %p82 = por %p80, %p81
      %p83 = scmp.ne.s32.totalorder %s75, %s77
      %p84 = scmp.eq.s32.totalorder %s25, 1
      %p85 = por %p83, %p84
      %p86 = scmp.ne.s32.totalorder %s77, %s78
      %p87 = scmp.eq.s32.totalorder %s25, 0
      %p88 = por %p86, %p87
      %p89 = scmp.ne.s32.totalorder %s77, %s78
      %p90 = scmp.eq.s32.totalorder %s26, 1
      %p91 = por %p89, %p90
      %p93 = scmp.ne.s32.totalorder %s78, %s92
      %p94 = scmp.eq.s32.totalorder %s26, 0
      %p95 = por %p93, %p94
      %s97 = sadd.s32 %s96, 1
      %p100 = scmp.eq.s32.totalorder %s20, 1
      %p101 = scmp.ne.s32.totalorder %s96, %s98
      %p102 = scmp.eq.s32.totalorder %s20, 0
      %p103 = por %p101, %p102
      %p104 = scmp.ne.s32.totalorder %s96, %s98
      %p105 = scmp.eq.s32.totalorder %s25, 1
      %p106 = por %p104, %p105
      %p107 = scmp.ne.s32.totalorder %s98, %s99
      %p108 = scmp.eq.s32.totalorder %s25, 0
      %p109 = por %p107, %p108
      %p110 = scmp.ne.s32.totalorder %s98, %s99
      %p111 = scmp.eq.s32.totalorder %s26, 1
      %p112 = por %p110, %p111
      %p114 = scmp.ne.s32.totalorder %s99, %s113
      %p115 = scmp.eq.s32.totalorder %s26, 0
      %p116 = por %p114, %p115
      %s118 = sadd.s32 %s117, 1
      %p121 = scmp.eq.s32.totalorder %s20, 1
      %p122 = scmp.ne.s32.totalorder %s117, %s119
      %p123 = scmp.eq.s32.totalorder %s20, 0
      %p124 = por %p122, %p123
      %p125 = scmp.ne.s32.totalorder %s117, %s119
      %p126 = scmp.eq.s32.totalorder %s25, 1
      %p127 = por %p125, %p126
      %p128 = scmp.ne.s32.totalorder %s119, %s120
      %p129 = scmp.eq.s32.totalorder %s25, 0
      %p130 = por %p128, %p129
      %p131 = scmp.ne.s32.totalorder %s119, %s120
      %p132 = scmp.eq.s32.totalorder %s26, 1
      %p133 = por %p131, %p132
      %p135 = scmp.ne.s32.totalorder %s120, %s134
      %p136 = scmp.eq.s32.totalorder %s26, 0
      %p137 = por %p135, %p136
      %s139 = sadd.s32 %s138, 1
      %p142 = scmp.eq.s32.totalorder %s20, 1
      %p143 = scmp.ne.s32.totalorder %s138, %s140
      %p144 = scmp.eq.s32.totalorder %s20, 0
      %p145 = por %p143, %p144
      %p146 = scmp.ne.s32.totalorder %s138, %s140
      %p147 = scmp.eq.s32.totalorder %s25, 1
      %p148 = por %p146, %p147
      %p149 = scmp.ne.s32.totalorder %s140, %s141
      %p150 = scmp.eq.s32.totalorder %s25, 0
      %p151 = por %p149, %p150
      %p152 = scmp.ne.s32.totalorder %s140, %s141
      %p153 = scmp.eq.s32.totalorder %s26, 1
      %p154 = por %p152, %p153
      %p156 = scmp.ne.s32.totalorder %s141, %s155
      %p157 = scmp.eq.s32.totalorder %s26, 0
      %p158 = por %p156, %p157
      %s160 = sadd.s32 %s159, 1
      %p163 = scmp.eq.s32.totalorder %s20, 1
      %p164 = scmp.ne.s32.totalorder %s159, %s161
      %p165 = scmp.eq.s32.totalorder %s20, 0
      %p166 = por %p164, %p165
      %p167 = scmp.ne.s32.totalorder %s159, %s161
      %p168 = scmp.eq.s32.totalorder %s25, 1
      %p169 = por %p167, %p168
      %p170 = scmp.ne.s32.totalorder %s161, %s162
      %p171 = scmp.eq.s32.totalorder %s25, 0
      %p172 = por %p170, %p171
      %p173 = scmp.ne.s32.totalorder %s161, %s162
      %p174 = scmp.eq.s32.totalorder %s26, 1
      %p175 = por %p173, %p174
      %p177 = scmp.ne.s32.totalorder %s162, %s176
      %p178 = scmp.eq.s32.totalorder %s26, 0
      %p179 = por %p177, %p178
      %s181 = sadd.s32 %s180, 1
      %p184 = scmp.eq.s32.totalorder %s20, 1
      %p185 = scmp.ne.s32.totalorder %s180, %s182
      %p186 = scmp.eq.s32.totalorder %s20, 0
      %p187 = por %p185, %p186
      %p188 = scmp.ne.s32.totalorder %s180, %s182
      %p189 = scmp.eq.s32.totalorder %s25, 1
      %p190 = por %p188, %p189
      %p191 = scmp.ne.s32.totalorder %s182, %s183
      %p192 = scmp.eq.s32.totalorder %s25, 0
      %p193 = por %p191, %p192
      %p194 = scmp.ne.s32.totalorder %s182, %s183
      %p195 = scmp.eq.s32.totalorder %s26, 1
      %p196 = por %p194, %p195
      %p198 = scmp.ne.s32.totalorder %s183, %s197
      %p199 = scmp.eq.s32.totalorder %s26, 0
      %p200 = por %p198, %p199
      %s201 = ssub.s32 %s20, %s27
      %p202 = scmp.eq.s32.totalorder %s201, 0
      %s204 = sadd.s32 %s203, 1
      %s205 = scalar_select %p202, %s203, %s204
      %p208 = pneg %p202
      %p209 = scmp.eq.s32.totalorder %s20, 1
      %p210 = por %p208, %p209
      %p211 = scmp.ne.s32.totalorder %s203, %s206
      %p212 = scmp.eq.s32.totalorder %s20, 0
      %p213 = por %p211, %p212
      %p214 = scmp.ne.s32.totalorder %s203, %s206
      %p215 = scmp.eq.s32.totalorder %s25, 1
      %p216 = por %p214, %p215
      %p217 = scmp.ne.s32.totalorder %s206, %s207
      %p218 = scmp.eq.s32.totalorder %s25, 0
      %p219 = por %p217, %p218
      %p220 = scmp.ne.s32.totalorder %s206, %s207
      %p221 = scmp.eq.s32.totalorder %s26, 1
      %p222 = por %p220, %p221
      %p224 = scmp.ne.s32.totalorder %s207, %s223
      %p225 = scmp.eq.s32.totalorder %s26, 0
      %p226 = por %p224, %p225
      %p227 = scmp.le.s32.totalorder 1, %s20
      %p228 = scmp.lt.s32.totalorder %s20, 3
      %p229 = pnand %p227, %p228
      %p230 = pneg %p229
      // Predicated region
      $region9: #{tpu_custom_call.1} parent=5 // pred_check
        _
      $region10: #{tpu_custom_call.1} parent=5 // pred_check_branch
        %232 = sbr.rel (%p229) target = $region12
      $region11: #{tpu_custom_call.1} parent=5 // pred_region
        %s233 = ssub.s32 %s20, 1
        // Predicated region
        $region13: #{tpu_custom_call.1} parent=11 // pred_check
          %p234 = pneg %p67
        $region14: #{tpu_custom_call.1} parent=11 // pred_check_branch
          %236 = sbr.rel (%p234) target = $region16
        $region15: #{tpu_custom_call.1} parent=11 // pred_region
          _
        $region16: #{tpu_custom_call.1} parent=11 // pred_fallthru
          _
        // Predicated region
        $region17: #{tpu_custom_call.1} parent=11 // pred_check
          %p237 = pneg %p88
        $region18: #{tpu_custom_call.1} parent=11 // pred_check_branch
          %239 = sbr.rel (%p237) target = $region20
        $region19: #{tpu_custom_call.1} parent=11 // pred_region
          _
        $region20: #{tpu_custom_call.1} parent=11 // pred_fallthru
          _
        // Predicated region
        $region21: #{tpu_custom_call.1} parent=11 // pred_check
          %p240 = pneg %p109
        $region22: #{tpu_custom_call.1} parent=11 // pred_check_branch
          %242 = sbr.rel (%p240) target = $region24
        $region23: #{tpu_custom_call.1} parent=11 // pred_region
          _
        $region24: #{tpu_custom_call.1} parent=11 // pred_fallthru
          _
        // Predicated region
        $region25: #{tpu_custom_call.1} parent=11 // pred_check
          %p243 = pneg %p130
        $region26: #{tpu_custom_call.1} parent=11 // pred_check_branch
          %245 = sbr.rel (%p243) target = $region28
        $region27: #{tpu_custom_call.1} parent=11 // pred_region
          _
        $region28: #{tpu_custom_call.1} parent=11 // pred_fallthru
          _
        // Predicated region
        $region29: #{tpu_custom_call.1} parent=11 // pred_check
          %p246 = pneg %p151
        $region30: #{tpu_custom_call.1} parent=11 // pred_check_branch
          %248 = sbr.rel (%p246) target = $region32
        $region31: #{tpu_custom_call.1} parent=11 // pred_region
          _
        $region32: #{tpu_custom_call.1} parent=11 // pred_fallthru
          _
        // Predicated region
        $region33: #{tpu_custom_call.1} parent=11 // pred_check
          %p249 = pneg %p172
        $region34: #{tpu_custom_call.1} parent=11 // pred_check_branch
          %251 = sbr.rel (%p249) target = $region36
        $region35: #{tpu_custom_call.1} parent=11 // pred_region
          _
        $region36: #{tpu_custom_call.1} parent=11 // pred_fallthru
          _
        // Predicated region
        $region37: #{tpu_custom_call.1} parent=11 // pred_check
          %p252 = pneg %p193
        $region38: #{tpu_custom_call.1} parent=11 // pred_check_branch
          %254 = sbr.rel (%p252) target = $region40
        $region39: #{tpu_custom_call.1} parent=11 // pred_region
          _
        $region40: #{tpu_custom_call.1} parent=11 // pred_fallthru
          _
      $region12: #{tpu_custom_call.1} parent=5 // pred_fallthru
        _
      %p255 = scmp.lt.s32.totalorder %s20, 2
      // Predicated region
      $region41: #{tpu_custom_call.1} parent=5 // pred_check
        %p256 = pneg %p255
      $region42: #{tpu_custom_call.1} parent=5 // pred_check_branch
        %258 = sbr.rel (%p256) target = $region44
      $region43: #{tpu_custom_call.1} parent=5 // pred_region
        // Predicated region
        $region45: #{tpu_custom_call.1} parent=43 // pred_check
          %p259 = pneg %p40
        $region46: #{tpu_custom_call.1} parent=43 // pred_check_branch
          %261 = sbr.rel (%p259) target = $region48
        $region47: #{tpu_custom_call.1} parent=43 // pred_region
          %s262 = sand.u32 %s30, 1
          %s263 = scalar_lea.sflag [#allocation3], %s262
          %s264 = sand.u32 %s30, 1
          %s265 = smul.addr %s264, 8
          %s266 = scalar_lea.vmem [#allocation2], %s265
          %s268 = ssub.s32 128, 128
          %269 = vsyncadd %s263, %s268
          %s270 = smul.addr %s20, 2
          %s271 = smul.addr %s270, 64
          %s272 = scalar_lea.hbm %s0, %s271
          %s274 = sshll.u32 %s266, 4
          %s275 = int_to_ptr.vmem [resolvable:$true] %s274
          %277 = dma.hbm_to_vmem [thread:$0]  %s272, 128, %s275, %s263
        $region48: #{tpu_custom_call.1} parent=43 // pred_fallthru
          _
      $region44: #{tpu_custom_call.1} parent=5 // pred_fallthru
        _
      %p278 = scmp.le.s32.totalorder 1, %s20
      %p279 = scmp.lt.s32.totalorder %s20, 3
      %p280 = pnand %p278, %p279
      %p281 = pneg %p280
      // Predicated region
      $region49: #{tpu_custom_call.1} parent=5 // pred_check
        _
      $region50: #{tpu_custom_call.1} parent=5 // pred_check_branch
        %283 = sbr.rel (%p280) target = $region52
      $region51: #{tpu_custom_call.1} parent=5 // pred_region
        %s284 = ssub.s32 %s20, 1
        %s285 = sand.u32 %s33, 1
        %s286 = scalar_lea.sflag [#allocation3], %s285
        %s287 = sand.u32 %s33, 1
        %s288 = smul.addr %s287, 8
        %s289 = scalar_lea.vmem [#allocation2], %s288
        // Predicated region
        $region53: #{tpu_custom_call.1} parent=51 // pred_check
          %p290 = pneg %p46
        $region54: #{tpu_custom_call.1} parent=51 // pred_check_branch
          %292 = sbr.rel (%p290) target = $region56
        $region55: #{tpu_custom_call.1} parent=51 // pred_region
          %293 = dma.done %s286, 128
        $region56: #{tpu_custom_call.1} parent=51 // pred_fallthru
          _
        %s294 = sand.u32 %s33, 1
        %s295 = scalar_lea.sflag [#allocation3], %s294
        %s296 = sand.u32 %s33, 1
        %s297 = smul.addr %s296, 8
        %s298 = scalar_lea.vmem [#allocation2], %s297
        %p299 = pneg %p46
        %p300 = pneg %p43
        %p301 = pneg %p67
        %p302 = pneg %p64
        %p303 = pneg %p88
        %p304 = pneg %p85
        %p305 = pneg %p109
        %p306 = pneg %p106
        %p307 = pneg %p130
        %p308 = pneg %p127
        %p309 = pneg %p151
        %p310 = pneg %p148
        %p311 = pneg %p172
        %p312 = pneg %p169
        %p313 = pneg %p193
        %p314 = pneg %p190
        %p315 = pneg %p219
        %p316 = pneg %p216
        %s317 = sand.u32 %s206, 1
        %s318 = scalar_lea.sflag [#allocation4], %s317
        %s319 = sand.u32 %s206, 1
        %s320 = smul.addr %s319, 16
        %s321 = scalar_lea.vmem [#allocation5], %s320
        %v322 = vld [vmem:[%s2] sm:$0xff]
        %v323 = vld [vmem:[%s4] sm:$0xff]
        %v324 = vld [vmem:[%s6] sm:$0xff]
        %v325 = vld [vmem:[%s3] sm:$0xff]
        %v326 = vld [vmem:[%s5] sm:$0xff]
        %v327 = vld [vmem:[%s7] sm:$0xff]
        %v328 = vld [vmem:[%s1] sm:$0x3]
        %s329 = scalar_lea.vmem %s1, 2
        %v330 = vld [vmem:[%s329] sm:$0x3]
        %s331 = scalar_lea.vmem %s1, 4
        %v332 = vld [vmem:[%s331] sm:$0x3]
        %s333 = scalar_lea.vmem %s1, 6
        %v334 = vld [vmem:[%s333] sm:$0x3]
        %s335 = scalar_lea.vmem %s1, 10
        %v336 = vld [vmem:[%s335] sm:$0x3]
        %s337 = scalar_lea.vmem %s1, 12
        %v338 = vld [vmem:[%s337] sm:$0x3]
        %s339 = scalar_lea.vmem %s1, 14
        %v340 = vld [vmem:[%s339] sm:$0x3]
        %s341 = scalar_lea.vmem %s1, 16
        %v342 = vld [vmem:[%s341] sm:$0x3]
        %v343 = vld [vmem:[%s289] sm:$0xff]
        %v345 = vcombine.high %v343, %v343
        %347 = vrot.lane.b32.xlu0 %v343, 17
        %v348 = vpop.permute.xlu0 %347
        %349 = vrot.lane.b32.xlu0 %v345, 17
        %v350 = vpop.permute.xlu0 %349
        %v351 = vlaneseq
        %v352 = vand.u32 %v351, 127
        %vm353 = vcmp.lt.s32.totalorder %v352, 17
        %v354 = vsel %vm353, %v348, %v350
        %v355 = vsel %vm353, %v350, %v348
        %v357 = vlaneseq
        %v358 = vshrl.u32 %v357, 7
        %v359 = vsub.s32 0, %v358
        %v360 = vrot.slane %v328, %v359
        %v361 = vlaneseq
        %v362 = vshrl.u32 %v361, 7
        %v363 = vsub.s32 1, %v362
        %v364 = vrot.slane %v328, %v363
        %v367 = vmul.f32 %v355, %v360
        %v368 = vmul.f32 %v354, %v364
        %369 = vrot.lane.b32.xlu0 %v343, 16
        %v370 = vpop.permute.xlu0 %369
        %371 = vrot.lane.b32.xlu0 %v345, 16
        %v372 = vpop.permute.xlu0 %371
        %vm373 = vcmp.lt.s32.totalorder %v352, 16
        %v374 = vsel %vm373, %v370, %v372
        %v375 = vsel %vm373, %v372, %v370
        %v377 = vlaneseq
        %v378 = vshrl.u32 %v377, 7
        %v379 = vsub.s32 0, %v378
        %v380 = vrot.slane %v330, %v379
        %v381 = vlaneseq
        %v382 = vshrl.u32 %v381, 7
        %v383 = vsub.s32 1, %v382
        %v384 = vrot.slane %v330, %v383
        %v387 = vmul.f32 %v375, %v380
        %v388 = vmul.f32 %v374, %v384
        %389 = vrot.lane.b32.xlu0 %v343, 15
        %v390 = vpop.permute.xlu0 %389
        %391 = vrot.lane.b32.xlu0 %v345, 15
        %v392 = vpop.permute.xlu0 %391
        %vm393 = vcmp.lt.s32.totalorder %v352, 15
        %v394 = vsel %vm393, %v390, %v392
        %v395 = vsel %vm393, %v392, %v390
        %v397 = vlaneseq
        %v398 = vshrl.u32 %v397, 7
        %v399 = vsub.s32 0, %v398
        %v400 = vrot.slane %v332, %v399
        %v401 = vlaneseq
        %v402 = vshrl.u32 %v401, 7
        %v403 = vsub.s32 1, %v402
        %v404 = vrot.slane %v332, %v403
        %v407 = vmul.f32 %v395, %v400
        %v408 = vmul.f32 %v394, %v404
        %409 = vrot.lane.b32.xlu0 %v343, 1
        %v410 = vpop.permute.xlu0 %409
        %411 = vrot.lane.b32.xlu0 %v345, 1
        %v412 = vpop.permute.xlu0 %411
        %vm413 = vcmp.lt.s32.totalorder %v352, 1
        %v414 = vsel %vm413, %v410, %v412
        %v415 = vsel %vm413, %v412, %v410
        %v417 = vlaneseq
        %v418 = vshrl.u32 %v417, 7
        %v419 = vsub.s32 0, %v418
        %v420 = vrot.slane %v334, %v419
        %v421 = vlaneseq
        %v422 = vshrl.u32 %v421, 7
        %v423 = vsub.s32 1, %v422
        %v424 = vrot.slane %v334, %v423
        %v427 = vmul.f32 %v415, %v420
        %v428 = vmul.f32 %v414, %v424
        %429 = vrot.lane.b32.xlu0 %v343, 127
        %v430 = vpop.permute.xlu0 %429
        %431 = vrot.lane.b32.xlu0 %v345, 127
        %v432 = vpop.permute.xlu0 %431
        %vm433 = vcmp.lt.s32.totalorder %v352, 127
        %v434 = vsel %vm433, %v430, %v432
        %v435 = vsel %vm433, %v432, %v430
        %v437 = vlaneseq
        %v438 = vshrl.u32 %v437, 7
        %v439 = vsub.s32 0, %v438
        %v440 = vrot.slane %v336, %v439
        %v441 = vlaneseq
        %v442 = vshrl.u32 %v441, 7
        %v443 = vsub.s32 1, %v442
        %v444 = vrot.slane %v336, %v443
        %v447 = vmul.f32 %v434, %v440
        %v448 = vmul.f32 %v435, %v444
        %449 = vrot.lane.b32.xlu0 %v343, 113
        %v450 = vpop.permute.xlu0 %449
        %451 = vrot.lane.b32.xlu0 %v345, 113
        %v452 = vpop.permute.xlu0 %451
        %vm453 = vcmp.lt.s32.totalorder %v352, 113
        %v454 = vsel %vm453, %v450, %v452
        %v455 = vsel %vm453, %v452, %v450
        %v457 = vlaneseq
        %v458 = vshrl.u32 %v457, 7
        %v459 = vsub.s32 0, %v458
        %v460 = vrot.slane %v338, %v459
        %v461 = vlaneseq
        %v462 = vshrl.u32 %v461, 7
        %v463 = vsub.s32 1, %v462
        %v464 = vrot.slane %v338, %v463
        %v467 = vmul.f32 %v454, %v460
        %v468 = vmul.f32 %v455, %v464
        %469 = vrot.lane.b32.xlu0 %v343, 112
        %v470 = vpop.permute.xlu0 %469
        %471 = vrot.lane.b32.xlu0 %v345, 112
        %v472 = vpop.permute.xlu0 %471
        %vm473 = vcmp.lt.s32.totalorder %v352, 112
        %v474 = vsel %vm473, %v470, %v472
        %v475 = vsel %vm473, %v472, %v470
        %v477 = vlaneseq
        %v478 = vshrl.u32 %v477, 7
        %v479 = vsub.s32 0, %v478
        %v480 = vrot.slane %v340, %v479
        %v481 = vlaneseq
        %v482 = vshrl.u32 %v481, 7
        %v483 = vsub.s32 1, %v482
        %v484 = vrot.slane %v340, %v483
        %v487 = vmul.f32 %v474, %v480
        %v488 = vmul.f32 %v475, %v484
        %489 = vrot.lane.b32.xlu0 %v343, 111
        %v490 = vpop.permute.xlu0 %489
        %491 = vrot.lane.b32.xlu0 %v345, 111
        %v492 = vpop.permute.xlu0 %491
        %vm493 = vcmp.lt.s32.totalorder %v352, 111
        %v494 = vsel %vm493, %v490, %v492
        %v495 = vsel %vm493, %v492, %v490
        %v497 = vlaneseq
        %v498 = vshrl.u32 %v497, 7
        %v499 = vsub.s32 0, %v498
        %v500 = vrot.slane %v342, %v499
        %v501 = vlaneseq
        %v502 = vshrl.u32 %v501, 7
        %v503 = vsub.s32 1, %v502
        %v504 = vrot.slane %v342, %v503
        %v507 = vmul.f32 %v494, %v500
        %v508 = vmul.f32 %v495, %v504
        %v511 = vrot.slane %v387, 4
        %v512 = vrot.slane %v388, 4
        %v517 = vrot.slane %v427, 4
        %v518 = vrot.slane %v428, 4
        %v523 = vrot.slane %v447, 4
        %v524 = vrot.slane %v448, 4
        %v529 = vrot.slane %v487, 4
        %v530 = vrot.slane %v488, 4
        %vm533 = vcmask 1043456
        %v534 = vsel %vm533, %v367, %v511
        %v535 = vsel %vm533, %v368, %v512
        %v536 = vsel %vm533, %v407, %v517
        %v537 = vsel %vm533, %v408, %v518
        %v538 = vsel %vm533, %v343, %v523
        %v539 = vsel %vm533, %v345, %v524
        %v540 = vsel %vm533, %v467, %v529
        %v541 = vsel %vm533, %v468, %v530
        %543 = vset.pattern.permute.xlu0 0
        %544 = vperm.xlu0 %543, %v325
        %v545 = vpop.permute.xlu0 %544
        %vm547 = vcmask 293888
        %v549 = vsel %vm547, %v322, 0
        %v552 = vsel %vm533, %v507, 0
        %v555 = vsel %vm533, %v508, 0
        %v557 = vand.u32 %v535, 4294901760
        %558 = vmatprep.subr.mxu0 %v557
        %v559 = vand.u32 %v534, 4294901760
        %560 = vmatpush1.msra.mxu0 %v559
        %v561 = vand.u32 %v537, 4294901760
        %562 = vmatprep.subr.mxu0 %v561
        %v563 = vand.u32 %v536, 4294901760
        %564 = vmatpush1.msra.mxu0 %v563
        %v565 = vand.u32 %v539, 4294901760
        %566 = vmatprep.subr.mxu0 %v565
        %v567 = vand.u32 %v538, 4294901760
        %568 = vmatpush1.msra.mxu0 %v567
        %v569 = vand.u32 %v541, 4294901760
        %570 = vmatprep.subr.mxu0 %v569
        %v571 = vand.u32 %v540, 4294901760
        %572 = vmatpush1.msra.mxu0 %v571
        %v573 = vand.u32 %v555, 4294901760
        %574 = vmatprep.subr.mxu0 %v573
        %v575 = vand.u32 %v552, 4294901760
        %576 = vmatpush1.msra.mxu0 %v575
        %577 = vmatprep.subr.mxu0 0.0
        %578 = vmatpush1.msra.mxu0 0.0
        %579 = vmatprep.subr.mxu0 0.0
        %580 = vmatpush1.msra.mxu0 0.0
        %581 = vmatprep.subr.mxu0 0.0
        %582 = vmatpush1.msra.mxu0 0.0
        %583 = vmatprep.subr.mxu0 0.0
        %584 = vmatpush1.msra.mxu0 0.0
        %585 = vmatprep.subr.mxu0 0.0
        %586 = vmatpush1.msra.mxu0 0.0
        %587 = vmatprep.subr.mxu0 0.0
        %588 = vmatpush1.msra.mxu0 0.0
        %589 = vmatprep.subr.mxu0 0.0
        %590 = vmatpush1.msra.mxu0 0.0
        %591 = vmatprep.subr.mxu0 0.0
        %592 = vmatpush1.msra.mxu0 0.0
        %593 = vmatprep.subr.mxu0 0.0
        %594 = vmatpush1.msra.mxu0 0.0
        %595 = vmatprep.subr.mxu0 0.0
        %596 = vmatpush1.msra.mxu0 0.0
        %597 = vmatprep.subr.mxu0 0.0
        %598 = vmatpush1.msra.mxu0 0.0
        %599 = vmatprep.subr.mxu0 0.0
        %600 = vmatpush1.msra.mxu0 0.0
        %601 = vmatprep.subr.mxu0 0.0
        %602 = vmatpush1.msra.mxu0 0.0
        %603 = vmatprep.subr.mxu0 0.0
        %604 = vmatpush1.msra.mxu0 0.0
        %605 = vmatprep.subr.mxu0 0.0
        %606 = vmatpush1.msra.mxu0 0.0
        %607 = vmatprep.subr.mxu0 0.0
        %608 = vmatpush1.msra.mxu0 0.0
        %609 = vmatprep.subr.mxu0 0.0
        %610 = vmatpush1.msra.mxu0 0.0
        %611 = vmatprep.subr.mxu0 0.0
        %612 = vmatpush1.msra.mxu0 0.0
        %613 = vmatprep.subr.mxu0 0.0
        %614 = vmatpush1.msra.mxu0 0.0
        %615 = vmatprep.subr.mxu0 0.0
        %616 = vmatpush1.msra.mxu0 0.0
        %617 = vmatprep.subr.mxu0 0.0
        %618 = vmatpush1.msra.mxu0 0.0
        %619 = vmatprep.subr.mxu0 0.0
        %620 = vmatpush1.msra.mxu0 0.0
        %621 = vmatprep.subr.mxu0 0.0
        %622 = vmatpush1.msra.mxu0 0.0
        %623 = vmatprep.subr.mxu0 0.0
        %624 = vmatpush1.msra.mxu0 0.0
        %625 = vmatprep.subr.mxu0 0.0
        %626 = vmatpush1.msra.mxu0 0.0
        %627 = vmatprep.subr.mxu0 0.0
        %628 = vmatpush1.msra.mxu0 0.0
        %629 = vmatprep.subr.mxu0 0.0
        %630 = vmatpush1.msra.mxu0 0.0
        %631 = vmatprep.mubr.f32.mxu0 0.0
        %v632 = vand.u32 %v549, 4294901760
        %v633 = vsub.f32 %v549, %v632
        %v634 = vand.u32 %v633, 4294901760
        %v635 = vsub.f32 %v633, %v634
        %v636 = vand.u32 %v635, 4294901760
        %637 = vmatmul.mubr.f32.gmra.mrb[0].mxu0 %v636
        %v638 = vpop.f32.mrb[0].mxu0
        %v639 = vadd.f32 %v545, %v638
        %v640 = vpop.f32.mrb[0].mxu0
        %v641 = vadd.f32 %v545, %v640
        %642 = vdwg.mxu0
        %v643 = vand.u32 %v535, 4294901760
        %v644 = vsub.f32 %v535, %v643
        %v645 = vand.u32 %v644, 4294901760
        %v646 = vsub.f32 %v644, %v645
        %v647 = vand.u32 %v646, 4294901760
        %648 = vmatprep.subr.mxu0 %v647
        %v649 = vand.u32 %v534, 4294901760
        %v650 = vsub.f32 %v534, %v649
        %v651 = vand.u32 %v650, 4294901760
        %v652 = vsub.f32 %v650, %v651
        %v653 = vand.u32 %v652, 4294901760
        %654 = vmatpush1.msra.mxu0 %v653
        %v655 = vand.u32 %v537, 4294901760
        %v656 = vsub.f32 %v537, %v655
        %v657 = vand.u32 %v656, 4294901760
        %v658 = vsub.f32 %v656, %v657
        %v659 = vand.u32 %v658, 4294901760
        %660 = vmatprep.subr.mxu0 %v659
        %v661 = vand.u32 %v536, 4294901760
        %v662 = vsub.f32 %v536, %v661
        %v663 = vand.u32 %v662, 4294901760
        %v664 = vsub.f32 %v662, %v663
        %v665 = vand.u32 %v664, 4294901760
        %666 = vmatpush1.msra.mxu0 %v665
        %v667 = vand.u32 %v539, 4294901760
        %v668 = vsub.f32 %v539, %v667
        %v669 = vand.u32 %v668, 4294901760
        %v670 = vsub.f32 %v668, %v669
        %v671 = vand.u32 %v670, 4294901760
        %672 = vmatprep.subr.mxu0 %v671
        %v673 = vand.u32 %v538, 4294901760
        %v674 = vsub.f32 %v538, %v673
        %v675 = vand.u32 %v674, 4294901760
        %v676 = vsub.f32 %v674, %v675
        %v677 = vand.u32 %v676, 4294901760
        %678 = vmatpush1.msra.mxu0 %v677
        %v679 = vand.u32 %v541, 4294901760
        %v680 = vsub.f32 %v541, %v679
        %v681 = vand.u32 %v680, 4294901760
        %v682 = vsub.f32 %v680, %v681
        %v683 = vand.u32 %v682, 4294901760
        %684 = vmatprep.subr.mxu0 %v683
        %v685 = vand.u32 %v540, 4294901760
        %v686 = vsub.f32 %v540, %v685
        %v687 = vand.u32 %v686, 4294901760
        %v688 = vsub.f32 %v686, %v687
        %v689 = vand.u32 %v688, 4294901760
        %690 = vmatpush1.msra.mxu0 %v689
        %v691 = vand.u32 %v555, 4294901760
        %v692 = vsub.f32 %v555, %v691
        %v693 = vand.u32 %v692, 4294901760
        %v694 = vsub.f32 %v692, %v693
        %v695 = vand.u32 %v694, 4294901760
        %696 = vmatprep.subr.mxu0 %v695
        %v697 = vand.u32 %v552, 4294901760
        %v698 = vsub.f32 %v552, %v697
        %v699 = vand.u32 %v698, 4294901760
        %v700 = vsub.f32 %v698, %v699
        %v701 = vand.u32 %v700, 4294901760
        %702 = vmatpush1.msra.mxu0 %v701
        %703 = vmatprep.subr.mxu0 0.0
        %704 = vmatpush1.msra.mxu0 0.0
        %705 = vmatprep.subr.mxu0 0.0
        %706 = vmatpush1.msra.mxu0 0.0
        %707 = vmatprep.subr.mxu0 0.0
        %708 = vmatpush1.msra.mxu0 0.0
        %709 = vmatprep.subr.mxu0 0.0
        %710 = vmatpush1.msra.mxu0 0.0
        %711 = vmatprep.subr.mxu0 0.0
        %712 = vmatpush1.msra.mxu0 0.0
        %713 = vmatprep.subr.mxu0 0.0
        %714 = vmatpush1.msra.mxu0 0.0
        %715 = vmatprep.subr.mxu0 0.0
        %716 = vmatpush1.msra.mxu0 0.0
        %717 = vmatprep.subr.mxu0 0.0
        %718 = vmatpush1.msra.mxu0 0.0
        %719 = vmatprep.subr.mxu0 0.0
        %720 = vmatpush1.msra.mxu0 0.0
        %721 = vmatprep.subr.mxu0 0.0
        %722 = vmatpush1.msra.mxu0 0.0
        %723 = vmatprep.subr.mxu0 0.0
        %724 = vmatpush1.msra.mxu0 0.0
        %725 = vmatprep.subr.mxu0 0.0
        %726 = vmatpush1.msra.mxu0 0.0
        %727 = vmatprep.subr.mxu0 0.0
        %728 = vmatpush1.msra.mxu0 0.0
        %729 = vmatprep.subr.mxu0 0.0
        %730 = vmatpush1.msra.mxu0 0.0
        %731 = vmatprep.subr.mxu0 0.0
        %732 = vmatpush1.msra.mxu0 0.0
        %733 = vmatprep.subr.mxu0 0.0
        %734 = vmatpush1.msra.mxu0 0.0
        %735 = vmatprep.subr.mxu0 0.0
        %736 = vmatpush1.msra.mxu0 0.0
        %737 = vmatprep.subr.mxu0 0.0
        %738 = vmatpush1.msra.mxu0 0.0
        %739 = vmatprep.subr.mxu0 0.0
        %740 = vmatpush1.msra.mxu0 0.0
        %741 = vmatprep.subr.mxu0 0.0
        %742 = vmatpush1.msra.mxu0 0.0
        %743 = vmatprep.subr.mxu0 0.0
        %744 = vmatpush1.msra.mxu0 0.0
        %745 = vmatprep.subr.mxu0 0.0
        %746 = vmatpush1.msra.mxu0 0.0
        %747 = vmatprep.subr.mxu0 0.0
        %748 = vmatpush1.msra.mxu0 0.0
        %749 = vmatprep.subr.mxu0 0.0
        %750 = vmatpush1.msra.mxu0 0.0
        %751 = vmatprep.subr.mxu0 0.0
        %752 = vmatpush1.msra.mxu0 0.0
        %753 = vmatprep.subr.mxu0 0.0
        %754 = vmatpush1.msra.mxu0 0.0
        %755 = vmatprep.subr.mxu0 0.0
        %756 = vmatpush1.msra.mxu0 0.0
        %757 = vmatprep.mubr.f32.mxu0 0.0
        %v758 = vand.u32 %v549, 4294901760
        %759 = vmatmul.mubr.f32.gmra.mrb[0].mxu0 %v758
        %v760 = vpop.f32.mrb[0].mxu0
        %v761 = vadd.f32 %v639, %v760
        %v762 = vpop.f32.mrb[0].mxu0
        %v763 = vadd.f32 %v641, %v762
        %764 = vdwg.mxu0
        %v765 = vand.u32 %v535, 4294901760
        %v766 = vsub.f32 %v535, %v765
        %767 = vmatprep.subr.mxu0 %v766
        %v768 = vand.u32 %v534, 4294901760
        %v769 = vsub.f32 %v534, %v768
        %770 = vmatpush1.msra.mxu0 %v769
        %v771 = vand.u32 %v537, 4294901760
        %v772 = vsub.f32 %v537, %v771
        %773 = vmatprep.subr.mxu0 %v772
        %v774 = vand.u32 %v536, 4294901760
        %v775 = vsub.f32 %v536, %v774
        %776 = vmatpush1.msra.mxu0 %v775
        %v777 = vand.u32 %v539, 4294901760
        %v778 = vsub.f32 %v539, %v777
        %779 = vmatprep.subr.mxu0 %v778
        %v780 = vand.u32 %v538, 4294901760
        %v781 = vsub.f32 %v538, %v780
        %782 = vmatpush1.msra.mxu0 %v781
        %v783 = vand.u32 %v541, 4294901760
        %v784 = vsub.f32 %v541, %v783
        %785 = vmatprep.subr.mxu0 %v784
        %v786 = vand.u32 %v540, 4294901760
        %v787 = vsub.f32 %v540, %v786
        %788 = vmatpush1.msra.mxu0 %v787
        %v789 = vand.u32 %v555, 4294901760
        %v790 = vsub.f32 %v555, %v789
        %791 = vmatprep.subr.mxu0 %v790
        %v792 = vand.u32 %v552, 4294901760
        %v793 = vsub.f32 %v552, %v792
        %794 = vmatpush1.msra.mxu0 %v793
        %795 = vmatprep.subr.mxu0 0.0
        %796 = vmatpush1.msra.mxu0 0.0
        %797 = vmatprep.subr.mxu0 0.0
        %798 = vmatpush1.msra.mxu0 0.0
        %799 = vmatprep.subr.mxu0 0.0
        %800 = vmatpush1.msra.mxu0 0.0
        %801 = vmatprep.subr.mxu0 0.0
        %802 = vmatpush1.msra.mxu0 0.0
        %803 = vmatprep.subr.mxu0 0.0
        %804 = vmatpush1.msra.mxu0 0.0
        %805 = vmatprep.subr.mxu0 0.0
        %806 = vmatpush1.msra.mxu0 0.0
        %807 = vmatprep.subr.mxu0 0.0
        %808 = vmatpush1.msra.mxu0 0.0
        %809 = vmatprep.subr.mxu0 0.0
        %810 = vmatpush1.msra.mxu0 0.0
        %811 = vmatprep.subr.mxu0 0.0
        %812 = vmatpush1.msra.mxu0 0.0
        %813 = vmatprep.subr.mxu0 0.0
        %814 = vmatpush1.msra.mxu0 0.0
        %815 = vmatprep.subr.mxu0 0.0
        %816 = vmatpush1.msra.mxu0 0.0
        %817 = vmatprep.subr.mxu0 0.0
        %818 = vmatpush1.msra.mxu0 0.0
        %819 = vmatprep.subr.mxu0 0.0
        %820 = vmatpush1.msra.mxu0 0.0
        %821 = vmatprep.subr.mxu0 0.0
        %822 = vmatpush1.msra.mxu0 0.0
        %823 = vmatprep.subr.mxu0 0.0
        %824 = vmatpush1.msra.mxu0 0.0
        %825 = vmatprep.subr.mxu0 0.0
        %826 = vmatpush1.msra.mxu0 0.0
        %827 = vmatprep.subr.mxu0 0.0
        %828 = vmatpush1.msra.mxu0 0.0
        %829 = vmatprep.subr.mxu0 0.0
        %830 = vmatpush1.msra.mxu0 0.0
        %831 = vmatprep.subr.mxu0 0.0
        %832 = vmatpush1.msra.mxu0 0.0
        %833 = vmatprep.subr.mxu0 0.0
        %834 = vmatpush1.msra.mxu0 0.0
        %835 = vmatprep.subr.mxu0 0.0
        %836 = vmatpush1.msra.mxu0 0.0
        %837 = vmatprep.subr.mxu0 0.0
        %838 = vmatpush1.msra.mxu0 0.0
        %839 = vmatprep.subr.mxu0 0.0
        %840 = vmatpush1.msra.mxu0 0.0
        %841 = vmatprep.subr.mxu0 0.0
        %842 = vmatpush1.msra.mxu0 0.0
        %843 = vmatprep.subr.mxu0 0.0
        %844 = vmatpush1.msra.mxu0 0.0
        %845 = vmatprep.subr.mxu0 0.0
        %846 = vmatpush1.msra.mxu0 0.0
        %847 = vmatprep.subr.mxu0 0.0
        %848 = vmatpush1.msra.mxu0 0.0
        %849 = vmatprep.mubr.f32.mxu0 0.0
        %v850 = vand.u32 %v549, 4294901760
        %v851 = vsub.f32 %v549, %v850
        %852 = vmatmul.mubr.f32.gmra.mrb[0].mxu0 %v851
        %v853 = vpop.f32.mrb[0].mxu0
        %v854 = vadd.f32 %v761, %v853
        %v855 = vpop.f32.mrb[0].mxu0
        %v856 = vadd.f32 %v763, %v855
        %857 = vdwg.mxu0
        %v858 = vand.u32 %v535, 4294901760
        %859 = vmatprep.subr.mxu0 %v858
        %v860 = vand.u32 %v534, 4294901760
        %861 = vmatpush1.msra.mxu0 %v860
        %v862 = vand.u32 %v537, 4294901760
        %863 = vmatprep.subr.mxu0 %v862
        %v864 = vand.u32 %v536, 4294901760
        %865 = vmatpush1.msra.mxu0 %v864
        %v866 = vand.u32 %v539, 4294901760
        %867 = vmatprep.subr.mxu0 %v866
        %v868 = vand.u32 %v538, 4294901760
        %869 = vmatpush1.msra.mxu0 %v868
        %v870 = vand.u32 %v541, 4294901760
        %871 = vmatprep.subr.mxu0 %v870
        %v872 = vand.u32 %v540, 4294901760
        %873 = vmatpush1.msra.mxu0 %v872
        %v874 = vand.u32 %v555, 4294901760
        %875 = vmatprep.subr.mxu0 %v874
        %v876 = vand.u32 %v552, 4294901760
        %877 = vmatpush1.msra.mxu0 %v876
        %878 = vmatprep.subr.mxu0 0.0
        %879 = vmatpush1.msra.mxu0 0.0
        %880 = vmatprep.subr.mxu0 0.0
        %881 = vmatpush1.msra.mxu0 0.0
        %882 = vmatprep.subr.mxu0 0.0
        %883 = vmatpush1.msra.mxu0 0.0
        %884 = vmatprep.subr.mxu0 0.0
        %885 = vmatpush1.msra.mxu0 0.0
        %886 = vmatprep.subr.mxu0 0.0
        %887 = vmatpush1.msra.mxu0 0.0
        %888 = vmatprep.subr.mxu0 0.0
        %889 = vmatpush1.msra.mxu0 0.0
        %890 = vmatprep.subr.mxu0 0.0
        %891 = vmatpush1.msra.mxu0 0.0
        %892 = vmatprep.subr.mxu0 0.0
        %893 = vmatpush1.msra.mxu0 0.0
        %894 = vmatprep.subr.mxu0 0.0
        %895 = vmatpush1.msra.mxu0 0.0
        %896 = vmatprep.subr.mxu0 0.0
        %897 = vmatpush1.msra.mxu0 0.0
        %898 = vmatprep.subr.mxu0 0.0
        %899 = vmatpush1.msra.mxu0 0.0
        %900 = vmatprep.subr.mxu0 0.0
        %901 = vmatpush1.msra.mxu0 0.0
        %902 = vmatprep.subr.mxu0 0.0
        %903 = vmatpush1.msra.mxu0 0.0
        %904 = vmatprep.subr.mxu0 0.0
        %905 = vmatpush1.msra.mxu0 0.0
        %906 = vmatprep.subr.mxu0 0.0
        %907 = vmatpush1.msra.mxu0 0.0
        %908 = vmatprep.subr.mxu0 0.0
        %909 = vmatpush1.msra.mxu0 0.0
        %910 = vmatprep.subr.mxu0 0.0
        %911 = vmatpush1.msra.mxu0 0.0
        %912 = vmatprep.subr.mxu0 0.0
        %913 = vmatpush1.msra.mxu0 0.0
        %914 = vmatprep.subr.mxu0 0.0
        %915 = vmatpush1.msra.mxu0 0.0
        %916 = vmatprep.subr.mxu0 0.0
        %917 = vmatpush1.msra.mxu0 0.0
        %918 = vmatprep.subr.mxu0 0.0
        %919 = vmatpush1.msra.mxu0 0.0
        %920 = vmatprep.subr.mxu0 0.0
        %921 = vmatpush1.msra.mxu0 0.0
        %922 = vmatprep.subr.mxu0 0.0
        %923 = vmatpush1.msra.mxu0 0.0
        %924 = vmatprep.subr.mxu0 0.0
        %925 = vmatpush1.msra.mxu0 0.0
        %926 = vmatprep.subr.mxu0 0.0
        %927 = vmatpush1.msra.mxu0 0.0
        %928 = vmatprep.subr.mxu0 0.0
        %929 = vmatpush1.msra.mxu0 0.0
        %930 = vmatprep.subr.mxu0 0.0
        %931 = vmatpush1.msra.mxu0 0.0
        %932 = vmatprep.mubr.f32.mxu0 0.0
        %v933 = vand.u32 %v549, 4294901760
        %v934 = vsub.f32 %v549, %v933
        %v935 = vand.u32 %v934, 4294901760
        %936 = vmatmul.mubr.f32.gmra.mrb[0].mxu0 %v935
        %v937 = vpop.f32.mrb[0].mxu0
        %v938 = vadd.f32 %v854, %v937
        %v939 = vpop.f32.mrb[0].mxu0
        %v940 = vadd.f32 %v856, %v939
        %941 = vdwg.mxu0
        %v942 = vand.u32 %v535, 4294901760
        %v943 = vsub.f32 %v535, %v942
        %v944 = vand.u32 %v943, 4294901760
        %945 = vmatprep.subr.mxu0 %v944
        %v946 = vand.u32 %v534, 4294901760
        %v947 = vsub.f32 %v534, %v946
        %v948 = vand.u32 %v947, 4294901760
        %949 = vmatpush1.msra.mxu0 %v948
        %v950 = vand.u32 %v537, 4294901760
        %v951 = vsub.f32 %v537, %v950
        %v952 = vand.u32 %v951, 4294901760
        %953 = vmatprep.subr.mxu0 %v952
        %v954 = vand.u32 %v536, 4294901760
        %v955 = vsub.f32 %v536, %v954
        %v956 = vand.u32 %v955, 4294901760
        %957 = vmatpush1.msra.mxu0 %v956
        %v958 = vand.u32 %v539, 4294901760
        %v959 = vsub.f32 %v539, %v958
        %v960 = vand.u32 %v959, 4294901760
        %961 = vmatprep.subr.mxu0 %v960
        %v962 = vand.u32 %v538, 4294901760
        %v963 = vsub.f32 %v538, %v962
        %v964 = vand.u32 %v963, 4294901760
        %965 = vmatpush1.msra.mxu0 %v964
        %v966 = vand.u32 %v541, 4294901760
        %v967 = vsub.f32 %v541, %v966
        %v968 = vand.u32 %v967, 4294901760
        %969 = vmatprep.subr.mxu0 %v968
        %v970 = vand.u32 %v540, 4294901760
        %v971 = vsub.f32 %v540, %v970
        %v972 = vand.u32 %v971, 4294901760
        %973 = vmatpush1.msra.mxu0 %v972
        %v974 = vand.u32 %v555, 4294901760
        %v975 = vsub.f32 %v555, %v974
        %v976 = vand.u32 %v975, 4294901760
        %977 = vmatprep.subr.mxu0 %v976
        %v978 = vand.u32 %v552, 4294901760
        %v979 = vsub.f32 %v552, %v978
        %v980 = vand.u32 %v979, 4294901760
        %981 = vmatpush1.msra.mxu0 %v980
        %982 = vmatprep.subr.mxu0 0.0
        %983 = vmatpush1.msra.mxu0 0.0
        %984 = vmatprep.subr.mxu0 0.0
        %985 = vmatpush1.msra.mxu0 0.0
        %986 = vmatprep.subr.mxu0 0.0
        %987 = vmatpush1.msra.mxu0 0.0
        %988 = vmatprep.subr.mxu0 0.0
        %989 = vmatpush1.msra.mxu0 0.0
        %990 = vmatprep.subr.mxu0 0.0
        %991 = vmatpush1.msra.mxu0 0.0
        %992 = vmatprep.subr.mxu0 0.0
        %993 = vmatpush1.msra.mxu0 0.0
        %994 = vmatprep.subr.mxu0 0.0
        %995 = vmatpush1.msra.mxu0 0.0
        %996 = vmatprep.subr.mxu0 0.0
        %997 = vmatpush1.msra.mxu0 0.0
        %998 = vmatprep.subr.mxu0 0.0
        %999 = vmatpush1.msra.mxu0 0.0
        %1000 = vmatprep.subr.mxu0 0.0
        %1001 = vmatpush1.msra.mxu0 0.0
        %1002 = vmatprep.subr.mxu0 0.0
        %1003 = vmatpush1.msra.mxu0 0.0
        %1004 = vmatprep.subr.mxu0 0.0
        %1005 = vmatpush1.msra.mxu0 0.0
        %1006 = vmatprep.subr.mxu0 0.0
        %1007 = vmatpush1.msra.mxu0 0.0
        %1008 = vmatprep.subr.mxu0 0.0
        %1009 = vmatpush1.msra.mxu0 0.0
        %1010 = vmatprep.subr.mxu0 0.0
        %1011 = vmatpush1.msra.mxu0 0.0
        %1012 = vmatprep.subr.mxu0 0.0
        %1013 = vmatpush1.msra.mxu0 0.0
        %1014 = vmatprep.subr.mxu0 0.0
        %1015 = vmatpush1.msra.mxu0 0.0
        %1016 = vmatprep.subr.mxu0 0.0
        %1017 = vmatpush1.msra.mxu0 0.0
        %1018 = vmatprep.subr.mxu0 0.0
        %1019 = vmatpush1.msra.mxu0 0.0
        %1020 = vmatprep.subr.mxu0 0.0
        %1021 = vmatpush1.msra.mxu0 0.0
        %1022 = vmatprep.subr.mxu0 0.0
        %1023 = vmatpush1.msra.mxu0 0.0
        %1024 = vmatprep.subr.mxu0 0.0
        %1025 = vmatpush1.msra.mxu0 0.0
        %1026 = vmatprep.subr.mxu0 0.0
        %1027 = vmatpush1.msra.mxu0 0.0
        %1028 = vmatprep.subr.mxu0 0.0
        %1029 = vmatpush1.msra.mxu0 0.0
        %1030 = vmatprep.subr.mxu0 0.0
        %1031 = vmatpush1.msra.mxu0 0.0
        %1032 = vmatprep.subr.mxu0 0.0
        %1033 = vmatpush1.msra.mxu0 0.0
        %1034 = vmatprep.subr.mxu0 0.0
        %1035 = vmatpush1.msra.mxu0 0.0
        %1036 = vmatprep.mubr.f32.mxu0 0.0
        %v1037 = vand.u32 %v549, 4294901760
        %1038 = vmatmul.mubr.f32.gmra.mrb[0].mxu0 %v1037
        %v1039 = vpop.f32.mrb[0].mxu0
        %v1040 = vadd.f32 %v938, %v1039
        %v1041 = vpop.f32.mrb[0].mxu0
        %v1042 = vadd.f32 %v940, %v1041
        %1043 = vdwg.mxu0
        %v1044 = vand.u32 %v535, 4294901760
        %1045 = vmatprep.subr.mxu0 %v1044
        %v1046 = vand.u32 %v534, 4294901760
        %1047 = vmatpush1.msra.mxu0 %v1046
        %v1048 = vand.u32 %v537, 4294901760
        %1049 = vmatprep.subr.mxu0 %v1048
        %v1050 = vand.u32 %v536, 4294901760
        %1051 = vmatpush1.msra.mxu0 %v1050
        %v1052 = vand.u32 %v539, 4294901760
        %1053 = vmatprep.subr.mxu0 %v1052
        %v1054 = vand.u32 %v538, 4294901760
        %1055 = vmatpush1.msra.mxu0 %v1054
        %v1056 = vand.u32 %v541, 4294901760
        %1057 = vmatprep.subr.mxu0 %v1056
        %v1058 = vand.u32 %v540, 4294901760
        %1059 = vmatpush1.msra.mxu0 %v1058
        %v1060 = vand.u32 %v555, 4294901760
        %1061 = vmatprep.subr.mxu0 %v1060
        %v1062 = vand.u32 %v552, 4294901760
        %1063 = vmatpush1.msra.mxu0 %v1062
        %1064 = vmatprep.subr.mxu0 0.0
        %1065 = vmatpush1.msra.mxu0 0.0
        %1066 = vmatprep.subr.mxu0 0.0
        %1067 = vmatpush1.msra.mxu0 0.0
        %1068 = vmatprep.subr.mxu0 0.0
        %1069 = vmatpush1.msra.mxu0 0.0
        %1070 = vmatprep.subr.mxu0 0.0
        %1071 = vmatpush1.msra.mxu0 0.0
        %1072 = vmatprep.subr.mxu0 0.0
        %1073 = vmatpush1.msra.mxu0 0.0
        %1074 = vmatprep.subr.mxu0 0.0
        %1075 = vmatpush1.msra.mxu0 0.0
        %1076 = vmatprep.subr.mxu0 0.0
        %1077 = vmatpush1.msra.mxu0 0.0
        %1078 = vmatprep.subr.mxu0 0.0
        %1079 = vmatpush1.msra.mxu0 0.0
        %1080 = vmatprep.subr.mxu0 0.0
        %1081 = vmatpush1.msra.mxu0 0.0
        %1082 = vmatprep.subr.mxu0 0.0
        %1083 = vmatpush1.msra.mxu0 0.0
        %1084 = vmatprep.subr.mxu0 0.0
        %1085 = vmatpush1.msra.mxu0 0.0
        %1086 = vmatprep.subr.mxu0 0.0
        %1087 = vmatpush1.msra.mxu0 0.0
        %1088 = vmatprep.subr.mxu0 0.0
        %1089 = vmatpush1.msra.mxu0 0.0
        %1090 = vmatprep.subr.mxu0 0.0
        %1091 = vmatpush1.msra.mxu0 0.0
        %1092 = vmatprep.subr.mxu0 0.0
        %1093 = vmatpush1.msra.mxu0 0.0
        %1094 = vmatprep.subr.mxu0 0.0
        %1095 = vmatpush1.msra.mxu0 0.0
        %1096 = vmatprep.subr.mxu0 0.0
        %1097 = vmatpush1.msra.mxu0 0.0
        %1098 = vmatprep.subr.mxu0 0.0
        %1099 = vmatpush1.msra.mxu0 0.0
        %1100 = vmatprep.subr.mxu0 0.0
        %1101 = vmatpush1.msra.mxu0 0.0
        %1102 = vmatprep.subr.mxu0 0.0
        %1103 = vmatpush1.msra.mxu0 0.0
        %1104 = vmatprep.subr.mxu0 0.0
        %1105 = vmatpush1.msra.mxu0 0.0
        %1106 = vmatprep.subr.mxu0 0.0
        %1107 = vmatpush1.msra.mxu0 0.0
        %1108 = vmatprep.subr.mxu0 0.0
        %1109 = vmatpush1.msra.mxu0 0.0
        %1110 = vmatprep.subr.mxu0 0.0
        %1111 = vmatpush1.msra.mxu0 0.0
        %1112 = vmatprep.subr.mxu0 0.0
        %1113 = vmatpush1.msra.mxu0 0.0
        %1114 = vmatprep.subr.mxu0 0.0
        %1115 = vmatpush1.msra.mxu0 0.0
        %1116 = vmatprep.subr.mxu0 0.0
        %1117 = vmatpush1.msra.mxu0 0.0
        %1118 = vmatprep.mubr.f32.mxu0 0.0
        %v1119 = vand.u32 %v549, 4294901760
        %1120 = vmatmul.mubr.f32.gmra.mrb[0].mxu0 %v1119
        %v1121 = vpop.f32.mrb[0].mxu0
        %v1122 = vadd.f32 %v1040, %v1121
        %v1123 = vpop.f32.mrb[0].mxu0
        %v1124 = vadd.f32 %v1042, %v1123
        %1125 = vdwg.mxu0
        %v1126 = vmul.f32 %v1122, 0.1
        %v1127 = vmul.f32 %v1124, 0.1
        %v1128 = vmax.f32 %v1122, %v1126
        %v1129 = vmax.f32 %v1124, %v1127
        %1130 = vrot.lane.b32.xlu0 %v1128, 17
        %v1131 = vpop.permute.xlu0 %1130
        %1132 = vrot.lane.b32.xlu0 %v1129, 17
        %v1133 = vpop.permute.xlu0 %1132
        %v1134 = vsel %vm353, %v1131, %v1133
        %v1135 = vsel %vm353, %v1133, %v1131
        %v1136 = vmul.f32 %v1135, %v360
        %v1137 = vmul.f32 %v1134, %v364
        %1138 = vrot.lane.b32.xlu0 %v1128, 16
        %v1139 = vpop.permute.xlu0 %1138
        %1140 = vrot.lane.b32.xlu0 %v1129, 16
        %v1141 = vpop.permute.xlu0 %1140
        %v1142 = vsel %vm373, %v1139, %v1141
        %v1143 = vsel %vm373, %v1141, %v1139
        %v1144 = vmul.f32 %v1143, %v380
        %v1145 = vmul.f32 %v1142, %v384
        %1146 = vrot.lane.b32.xlu0 %v1128, 15
        %v1147 = vpop.permute.xlu0 %1146
        %1148 = vrot.lane.b32.xlu0 %v1129, 15
        %v1149 = vpop.permute.xlu0 %1148
        %v1150 = vsel %vm393, %v1147, %v1149
        %v1151 = vsel %vm393, %v1149, %v1147
        %v1152 = vmul.f32 %v1151, %v400
        %v1153 = vmul.f32 %v1150, %v404
        %1154 = vrot.lane.b32.xlu0 %v1128, 1
        %v1155 = vpop.permute.xlu0 %1154
        %1156 = vrot.lane.b32.xlu0 %v1129, 1
        %v1157 = vpop.permute.xlu0 %1156
        %v1158 = vsel %vm413, %v1155, %v1157
        %v1159 = vsel %vm413, %v1157, %v1155
        %v1160 = vmul.f32 %v1159, %v420
        %v1161 = vmul.f32 %v1158, %v424
        %1162 = vrot.lane.b32.xlu0 %v1128, 127
        %v1163 = vpop.permute.xlu0 %1162
        %1164 = vrot.lane.b32.xlu0 %v1129, 127
        %v1165 = vpop.permute.xlu0 %1164
        %v1166 = vsel %vm433, %v1163, %v1165
        %v1167 = vsel %vm433, %v1165, %v1163
        %v1168 = vmul.f32 %v1166, %v440
        %v1169 = vmul.f32 %v1167, %v444
        %1170 = vrot.lane.b32.xlu0 %v1128, 113
        %v1171 = vpop.permute.xlu0 %1170
        %1172 = vrot.lane.b32.xlu0 %v1129, 113
        %v1173 = vpop.permute.xlu0 %1172
        %v1174 = vsel %vm453, %v1171, %v1173
        %v1175 = vsel %vm453, %v1173, %v1171
        %v1176 = vmul.f32 %v1174, %v460
        %v1177 = vmul.f32 %v1175, %v464
        %1178 = vrot.lane.b32.xlu0 %v1128, 112
        %v1179 = vpop.permute.xlu0 %1178
        %1180 = vrot.lane.b32.xlu0 %v1129, 112
        %v1181 = vpop.permute.xlu0 %1180
        %v1182 = vsel %vm473, %v1179, %v1181
        %v1183 = vsel %vm473, %v1181, %v1179
        %v1184 = vmul.f32 %v1182, %v480
        %v1185 = vmul.f32 %v1183, %v484
        %1186 = vrot.lane.b32.xlu0 %v1128, 111
        %v1187 = vpop.permute.xlu0 %1186
        %1188 = vrot.lane.b32.xlu0 %v1129, 111
        %v1189 = vpop.permute.xlu0 %1188
        %v1190 = vsel %vm493, %v1187, %v1189
        %v1191 = vsel %vm493, %v1189, %v1187
        %v1192 = vmul.f32 %v1190, %v500
        %v1193 = vmul.f32 %v1191, %v504
        %1195 = vset.pattern.permute.xlu0 0
        %1196 = vperm.xlu0 %1195, %v326
        %v1197 = vpop.permute.xlu0 %1196
        %vm1199 = vcmask 588800
        %v1201 = vsel %vm1199, %v323, 0
        %v1203 = vand.u32 %v1137, 4294901760
        %1204 = vmatprep.subr.mxu0 %v1203
        %v1205 = vand.u32 %v1136, 4294901760
        %1206 = vmatpush1.msra.mxu0 %v1205
        %v1207 = vand.u32 %v1145, 4294901760
        %1208 = vmatprep.subr.mxu0 %v1207
        %v1209 = vand.u32 %v1144, 4294901760
        %1210 = vmatpush1.msra.mxu0 %v1209
        %v1211 = vand.u32 %v1153, 4294901760
        %1212 = vmatprep.subr.mxu0 %v1211
        %v1213 = vand.u32 %v1152, 4294901760
        %1214 = vmatpush1.msra.mxu0 %v1213
        %v1215 = vand.u32 %v1161, 4294901760
        %1216 = vmatprep.subr.mxu0 %v1215
        %v1217 = vand.u32 %v1160, 4294901760
        %1218 = vmatpush1.msra.mxu0 %v1217
        %v1219 = vand.u32 %v1129, 4294901760
        %1220 = vmatprep.subr.mxu0 %v1219
        %v1221 = vand.u32 %v1128, 4294901760
        %1222 = vmatpush1.msra.mxu0 %v1221
        %v1223 = vand.u32 %v1169, 4294901760
        %1224 = vmatprep.subr.mxu0 %v1223
        %v1225 = vand.u32 %v1168, 4294901760
        %1226 = vmatpush1.msra.mxu0 %v1225
        %v1227 = vand.u32 %v1177, 4294901760
        %1228 = vmatprep.subr.mxu0 %v1227
        %v1229 = vand.u32 %v1176, 4294901760
        %1230 = vmatpush1.msra.mxu0 %v1229
        %v1231 = vand.u32 %v1185, 4294901760
        %1232 = vmatprep.subr.mxu0 %v1231
        %v1233 = vand.u32 %v1184, 4294901760
        %1234 = vmatpush1.msra.mxu0 %v1233
        %v1235 = vand.u32 %v1193, 4294901760
        %1236 = vmatprep.subr.mxu0 %v1235
        %v1237 = vand.u32 %v1192, 4294901760
        %1238 = vmatpush1.msra.mxu0 %v1237
        %1239 = vmatprep.subr.mxu0 0.0
        %1240 = vmatpush1.msra.mxu0 0.0
        %1241 = vmatprep.subr.mxu0 0.0
        %1242 = vmatpush1.msra.mxu0 0.0
        %1243 = vmatprep.subr.mxu0 0.0
        %1244 = vmatpush1.msra.mxu0 0.0
        %1245 = vmatprep.subr.mxu0 0.0
        %1246 = vmatpush1.msra.mxu0 0.0
        %1247 = vmatprep.subr.mxu0 0.0
        %1248 = vmatpush1.msra.mxu0 0.0
        %1249 = vmatprep.subr.mxu0 0.0
        %1250 = vmatpush1.msra.mxu0 0.0
        %1251 = vmatprep.subr.mxu0 0.0
        %1252 = vmatpush1.msra.mxu0 0.0
        %1253 = vmatprep.subr.mxu0 0.0
        %1254 = vmatpush1.msra.mxu0 0.0
        %1255 = vmatprep.subr.mxu0 0.0
        %1256 = vmatpush1.msra.mxu0 0.0
        %1257 = vmatprep.subr.mxu0 0.0
        %1258 = vmatpush1.msra.mxu0 0.0
        %1259 = vmatprep.subr.mxu0 0.0
        %1260 = vmatpush1.msra.mxu0 0.0
        %1261 = vmatprep.subr.mxu0 0.0
        %1262 = vmatpush1.msra.mxu0 0.0
        %1263 = vmatprep.subr.mxu0 0.0
        %1264 = vmatpush1.msra.mxu0 0.0
        %1265 = vmatprep.subr.mxu0 0.0
        %1266 = vmatpush1.msra.mxu0 0.0
        %1267 = vmatprep.subr.mxu0 0.0
        %1268 = vmatpush1.msra.mxu0 0.0
        %1269 = vmatprep.subr.mxu0 0.0
        %1270 = vmatpush1.msra.mxu0 0.0
        %1271 = vmatprep.subr.mxu0 0.0
        %1272 = vmatpush1.msra.mxu0 0.0
        %1273 = vmatprep.subr.mxu0 0.0
        %1274 = vmatpush1.msra.mxu0 0.0
        %1275 = vmatprep.subr.mxu0 0.0
        %1276 = vmatpush1.msra.mxu0 0.0
        %1277 = vmatprep.subr.mxu0 0.0
        %1278 = vmatpush1.msra.mxu0 0.0
        %1279 = vmatprep.subr.mxu0 0.0
        %1280 = vmatpush1.msra.mxu0 0.0
        %1281 = vmatprep.subr.mxu0 0.0
        %1282 = vmatpush1.msra.mxu0 0.0
        %1283 = vmatprep.subr.mxu0 0.0
        %1284 = vmatpush1.msra.mxu0 0.0
        %1285 = vmatprep.mubr.f32.mxu0 0.0
        %v1286 = vand.u32 %v1201, 4294901760
        %v1287 = vsub.f32 %v1201, %v1286
        %v1288 = vand.u32 %v1287, 4294901760
        %v1289 = vsub.f32 %v1287, %v1288
        %v1290 = vand.u32 %v1289, 4294901760
        %1291 = vmatmul.mubr.f32.gmra.mrb[0].mxu0 %v1290
        %v1292 = vpop.f32.mrb[0].mxu0
        %v1293 = vadd.f32 %v1197, %v1292
        %v1294 = vpop.f32.mrb[0].mxu0
        %v1295 = vadd.f32 %v1197, %v1294
        %1296 = vdwg.mxu0
        %v1297 = vand.u32 %v1137, 4294901760
        %v1298 = vsub.f32 %v1137, %v1297
        %v1299 = vand.u32 %v1298, 4294901760
        %v1300 = vsub.f32 %v1298, %v1299
        %v1301 = vand.u32 %v1300, 4294901760
        %1302 = vmatprep.subr.mxu0 %v1301
        %v1303 = vand.u32 %v1136, 4294901760
        %v1304 = vsub.f32 %v1136, %v1303
        %v1305 = vand.u32 %v1304, 4294901760
        %v1306 = vsub.f32 %v1304, %v1305
        %v1307 = vand.u32 %v1306, 4294901760
        %1308 = vmatpush1.msra.mxu0 %v1307
        %v1309 = vand.u32 %v1145, 4294901760
        %v1310 = vsub.f32 %v1145, %v1309
        %v1311 = vand.u32 %v1310, 4294901760
        %v1312 = vsub.f32 %v1310, %v1311
        %v1313 = vand.u32 %v1312, 4294901760
        %1314 = vmatprep.subr.mxu0 %v1313
        %v1315 = vand.u32 %v1144, 4294901760
        %v1316 = vsub.f32 %v1144, %v1315
        %v1317 = vand.u32 %v1316, 4294901760
        %v1318 = vsub.f32 %v1316, %v1317
        %v1319 = vand.u32 %v1318, 4294901760
        %1320 = vmatpush1.msra.mxu0 %v1319
        %v1321 = vand.u32 %v1153, 4294901760
        %v1322 = vsub.f32 %v1153, %v1321
        %v1323 = vand.u32 %v1322, 4294901760
        %v1324 = vsub.f32 %v1322, %v1323
        %v1325 = vand.u32 %v1324, 4294901760
        %1326 = vmatprep.subr.mxu0 %v1325
        %v1327 = vand.u32 %v1152, 4294901760
        %v1328 = vsub.f32 %v1152, %v1327
        %v1329 = vand.u32 %v1328, 4294901760
        %v1330 = vsub.f32 %v1328, %v1329
        %v1331 = vand.u32 %v1330, 4294901760
        %1332 = vmatpush1.msra.mxu0 %v1331
        %v1333 = vand.u32 %v1161, 4294901760
        %v1334 = vsub.f32 %v1161, %v1333
        %v1335 = vand.u32 %v1334, 4294901760
        %v1336 = vsub.f32 %v1334, %v1335
        %v1337 = vand.u32 %v1336, 4294901760
        %1338 = vmatprep.subr.mxu0 %v1337
        %v1339 = vand.u32 %v1160, 4294901760
        %v1340 = vsub.f32 %v1160, %v1339
        %v1341 = vand.u32 %v1340, 4294901760
        %v1342 = vsub.f32 %v1340, %v1341
        %v1343 = vand.u32 %v1342, 4294901760
        %1344 = vmatpush1.msra.mxu0 %v1343
        %v1345 = vand.u32 %v1129, 4294901760
        %v1346 = vsub.f32 %v1129, %v1345
        %v1347 = vand.u32 %v1346, 4294901760
        %v1348 = vsub.f32 %v1346, %v1347
        %v1349 = vand.u32 %v1348, 4294901760
        %1350 = vmatprep.subr.mxu0 %v1349
        %v1351 = vand.u32 %v1128, 4294901760
        %v1352 = vsub.f32 %v1128, %v1351
        %v1353 = vand.u32 %v1352, 4294901760
        %v1354 = vsub.f32 %v1352, %v1353
        %v1355 = vand.u32 %v1354, 4294901760
        %1356 = vmatpush1.msra.mxu0 %v1355
        %v1357 = vand.u32 %v1169, 4294901760
        %v1358 = vsub.f32 %v1169, %v1357
        %v1359 = vand.u32 %v1358, 4294901760
        %v1360 = vsub.f32 %v1358, %v1359
        %v1361 = vand.u32 %v1360, 4294901760
        %1362 = vmatprep.subr.mxu0 %v1361
        %v1363 = vand.u32 %v1168, 4294901760
        %v1364 = vsub.f32 %v1168, %v1363
        %v1365 = vand.u32 %v1364, 4294901760
        %v1366 = vsub.f32 %v1364, %v1365
        %v1367 = vand.u32 %v1366, 4294901760
        %1368 = vmatpush1.msra.mxu0 %v1367
        %v1369 = vand.u32 %v1177, 4294901760
        %v1370 = vsub.f32 %v1177, %v1369
        %v1371 = vand.u32 %v1370, 4294901760
        %v1372 = vsub.f32 %v1370, %v1371
        %v1373 = vand.u32 %v1372, 4294901760
        %1374 = vmatprep.subr.mxu0 %v1373
        %v1375 = vand.u32 %v1176, 4294901760
        %v1376 = vsub.f32 %v1176, %v1375
        %v1377 = vand.u32 %v1376, 4294901760
        %v1378 = vsub.f32 %v1376, %v1377
        %v1379 = vand.u32 %v1378, 4294901760
        %1380 = vmatpush1.msra.mxu0 %v1379
        %v1381 = vand.u32 %v1185, 4294901760
        %v1382 = vsub.f32 %v1185, %v1381
        %v1383 = vand.u32 %v1382, 4294901760
        %v1384 = vsub.f32 %v1382, %v1383
        %v1385 = vand.u32 %v1384, 4294901760
        %1386 = vmatprep.subr.mxu0 %v1385
        %v1387 = vand.u32 %v1184, 4294901760
        %v1388 = vsub.f32 %v1184, %v1387
        %v1389 = vand.u32 %v1388, 4294901760
        %v1390 = vsub.f32 %v1388, %v1389
        %v1391 = vand.u32 %v1390, 4294901760
        %1392 = vmatpush1.msra.mxu0 %v1391
        %v1393 = vand.u32 %v1193, 4294901760
        %v1394 = vsub.f32 %v1193, %v1393
        %v1395 = vand.u32 %v1394, 4294901760
        %v1396 = vsub.f32 %v1394, %v1395
        %v1397 = vand.u32 %v1396, 4294901760
        %1398 = vmatprep.subr.mxu0 %v1397
        %v1399 = vand.u32 %v1192, 4294901760
        %v1400 = vsub.f32 %v1192, %v1399
        %v1401 = vand.u32 %v1400, 4294901760
        %v1402 = vsub.f32 %v1400, %v1401
        %v1403 = vand.u32 %v1402, 4294901760
        %1404 = vmatpush1.msra.mxu0 %v1403
        %1405 = vmatprep.subr.mxu0 0.0
        %1406 = vmatpush1.msra.mxu0 0.0
        %1407 = vmatprep.subr.mxu0 0.0
        %1408 = vmatpush1.msra.mxu0 0.0
        %1409 = vmatprep.subr.mxu0 0.0
        %1410 = vmatpush1.msra.mxu0 0.0
        %1411 = vmatprep.subr.mxu0 0.0
        %1412 = vmatpush1.msra.mxu0 0.0
        %1413 = vmatprep.subr.mxu0 0.0
        %1414 = vmatpush1.msra.mxu0 0.0
        %1415 = vmatprep.subr.mxu0 0.0
        %1416 = vmatpush1.msra.mxu0 0.0
        %1417 = vmatprep.subr.mxu0 0.0
        %1418 = vmatpush1.msra.mxu0 0.0
        %1419 = vmatprep.subr.mxu0 0.0
        %1420 = vmatpush1.msra.mxu0 0.0
        %1421 = vmatprep.subr.mxu0 0.0
        %1422 = vmatpush1.msra.mxu0 0.0
        %1423 = vmatprep.subr.mxu0 0.0
        %1424 = vmatpush1.msra.mxu0 0.0
        %1425 = vmatprep.subr.mxu0 0.0
        %1426 = vmatpush1.msra.mxu0 0.0
        %1427 = vmatprep.subr.mxu0 0.0
        %1428 = vmatpush1.msra.mxu0 0.0
        %1429 = vmatprep.subr.mxu0 0.0
        %1430 = vmatpush1.msra.mxu0 0.0
        %1431 = vmatprep.subr.mxu0 0.0
        %1432 = vmatpush1.msra.mxu0 0.0
        %1433 = vmatprep.subr.mxu0 0.0
        %1434 = vmatpush1.msra.mxu0 0.0
        %1435 = vmatprep.subr.mxu0 0.0
        %1436 = vmatpush1.msra.mxu0 0.0
        %1437 = vmatprep.subr.mxu0 0.0
        %1438 = vmatpush1.msra.mxu0 0.0
        %1439 = vmatprep.subr.mxu0 0.0
        %1440 = vmatpush1.msra.mxu0 0.0
        %1441 = vmatprep.subr.mxu0 0.0
        %1442 = vmatpush1.msra.mxu0 0.0
        %1443 = vmatprep.subr.mxu0 0.0
        %1444 = vmatpush1.msra.mxu0 0.0
        %1445 = vmatprep.subr.mxu0 0.0
        %1446 = vmatpush1.msra.mxu0 0.0
        %1447 = vmatprep.subr.mxu0 0.0
        %1448 = vmatpush1.msra.mxu0 0.0
        %1449 = vmatprep.subr.mxu0 0.0
        %1450 = vmatpush1.msra.mxu0 0.0
        %1451 = vmatprep.mubr.f32.mxu0 0.0
        %v1452 = vand.u32 %v1201, 4294901760
        %1453 = vmatmul.mubr.f32.gmra.mrb[0].mxu0 %v1452
        %v1454 = vpop.f32.mrb[0].mxu0
        %v1455 = vadd.f32 %v1293, %v1454
        %v1456 = vpop.f32.mrb[0].mxu0
        %v1457 = vadd.f32 %v1295, %v1456
        %1458 = vdwg.mxu0
        %v1459 = vand.u32 %v1137, 4294901760
        %v1460 = vsub.f32 %v1137, %v1459
        %1461 = vmatprep.subr.mxu0 %v1460
        %v1462 = vand.u32 %v1136, 4294901760
        %v1463 = vsub.f32 %v1136, %v1462
        %1464 = vmatpush1.msra.mxu0 %v1463
        %v1465 = vand.u32 %v1145, 4294901760
        %v1466 = vsub.f32 %v1145, %v1465
        %1467 = vmatprep.subr.mxu0 %v1466
        %v1468 = vand.u32 %v1144, 4294901760
        %v1469 = vsub.f32 %v1144, %v1468
        %1470 = vmatpush1.msra.mxu0 %v1469
        %v1471 = vand.u32 %v1153, 4294901760
        %v1472 = vsub.f32 %v1153, %v1471
        %1473 = vmatprep.subr.mxu0 %v1472
        %v1474 = vand.u32 %v1152, 4294901760
        %v1475 = vsub.f32 %v1152, %v1474
        %1476 = vmatpush1.msra.mxu0 %v1475
        %v1477 = vand.u32 %v1161, 4294901760
        %v1478 = vsub.f32 %v1161, %v1477
        %1479 = vmatprep.subr.mxu0 %v1478
        %v1480 = vand.u32 %v1160, 4294901760
        %v1481 = vsub.f32 %v1160, %v1480
        %1482 = vmatpush1.msra.mxu0 %v1481
        %v1483 = vand.u32 %v1129, 4294901760
        %v1484 = vsub.f32 %v1129, %v1483
        %1485 = vmatprep.subr.mxu0 %v1484
        %v1486 = vand.u32 %v1128, 4294901760
        %v1487 = vsub.f32 %v1128, %v1486
        %1488 = vmatpush1.msra.mxu0 %v1487
        %v1489 = vand.u32 %v1169, 4294901760
        %v1490 = vsub.f32 %v1169, %v1489
        %1491 = vmatprep.subr.mxu0 %v1490
        %v1492 = vand.u32 %v1168, 4294901760
        %v1493 = vsub.f32 %v1168, %v1492
        %1494 = vmatpush1.msra.mxu0 %v1493
        %v1495 = vand.u32 %v1177, 4294901760
        %v1496 = vsub.f32 %v1177, %v1495
        %1497 = vmatprep.subr.mxu0 %v1496
        %v1498 = vand.u32 %v1176, 4294901760
        %v1499 = vsub.f32 %v1176, %v1498
        %1500 = vmatpush1.msra.mxu0 %v1499
        %v1501 = vand.u32 %v1185, 4294901760
        %v1502 = vsub.f32 %v1185, %v1501
        %1503 = vmatprep.subr.mxu0 %v1502
        %v1504 = vand.u32 %v1184, 4294901760
        %v1505 = vsub.f32 %v1184, %v1504
        %1506 = vmatpush1.msra.mxu0 %v1505
        %v1507 = vand.u32 %v1193, 4294901760
        %v1508 = vsub.f32 %v1193, %v1507
        %1509 = vmatprep.subr.mxu0 %v1508
        %v1510 = vand.u32 %v1192, 4294901760
        %v1511 = vsub.f32 %v1192, %v1510
        %1512 = vmatpush1.msra.mxu0 %v1511
        %1513 = vmatprep.subr.mxu0 0.0
        %1514 = vmatpush1.msra.mxu0 0.0
        %1515 = vmatprep.subr.mxu0 0.0
        %1516 = vmatpush1.msra.mxu0 0.0
        %1517 = vmatprep.subr.mxu0 0.0
        %1518 = vmatpush1.msra.mxu0 0.0
        %1519 = vmatprep.subr.mxu0 0.0
        %1520 = vmatpush1.msra.mxu0 0.0
        %1521 = vmatprep.subr.mxu0 0.0
        %1522 = vmatpush1.msra.mxu0 0.0
        %1523 = vmatprep.subr.mxu0 0.0
        %1524 = vmatpush1.msra.mxu0 0.0
        %1525 = vmatprep.subr.mxu0 0.0
        %1526 = vmatpush1.msra.mxu0 0.0
        %1527 = vmatprep.subr.mxu0 0.0
        %1528 = vmatpush1.msra.mxu0 0.0
        %1529 = vmatprep.subr.mxu0 0.0
        %1530 = vmatpush1.msra.mxu0 0.0
        %1531 = vmatprep.subr.mxu0 0.0
        %1532 = vmatpush1.msra.mxu0 0.0
        %1533 = vmatprep.subr.mxu0 0.0
        %1534 = vmatpush1.msra.mxu0 0.0
        %1535 = vmatprep.subr.mxu0 0.0
        %1536 = vmatpush1.msra.mxu0 0.0
        %1537 = vmatprep.subr.mxu0 0.0
        %1538 = vmatpush1.msra.mxu0 0.0
        %1539 = vmatprep.subr.mxu0 0.0
        %1540 = vmatpush1.msra.mxu0 0.0
        %1541 = vmatprep.subr.mxu0 0.0
        %1542 = vmatpush1.msra.mxu0 0.0
        %1543 = vmatprep.subr.mxu0 0.0
        %1544 = vmatpush1.msra.mxu0 0.0
        %1545 = vmatprep.subr.mxu0 0.0
        %1546 = vmatpush1.msra.mxu0 0.0
        %1547 = vmatprep.subr.mxu0 0.0
        %1548 = vmatpush1.msra.mxu0 0.0
        %1549 = vmatprep.subr.mxu0 0.0
        %1550 = vmatpush1.msra.mxu0 0.0
        %1551 = vmatprep.subr.mxu0 0.0
        %1552 = vmatpush1.msra.mxu0 0.0
        %1553 = vmatprep.subr.mxu0 0.0
        %1554 = vmatpush1.msra.mxu0 0.0
        %1555 = vmatprep.subr.mxu0 0.0
        %1556 = vmatpush1.msra.mxu0 0.0
        %1557 = vmatprep.subr.mxu0 0.0
        %1558 = vmatpush1.msra.mxu0 0.0
        %1559 = vmatprep.mubr.f32.mxu0 0.0
        %v1560 = vand.u32 %v1201, 4294901760
        %v1561 = vsub.f32 %v1201, %v1560
        %1562 = vmatmul.mubr.f32.gmra.mrb[0].mxu0 %v1561
        %v1563 = vpop.f32.mrb[0].mxu0
        %v1564 = vadd.f32 %v1455, %v1563
        %v1565 = vpop.f32.mrb[0].mxu0
        %v1566 = vadd.f32 %v1457, %v1565
        %1567 = vdwg.mxu0
        %v1568 = vand.u32 %v1137, 4294901760
        %1569 = vmatprep.subr.mxu0 %v1568
        %v1570 = vand.u32 %v1136, 4294901760
        %1571 = vmatpush1.msra.mxu0 %v1570
        %v1572 = vand.u32 %v1145, 4294901760
        %1573 = vmatprep.subr.mxu0 %v1572
        %v1574 = vand.u32 %v1144, 4294901760
        %1575 = vmatpush1.msra.mxu0 %v1574
        %v1576 = vand.u32 %v1153, 4294901760
        %1577 = vmatprep.subr.mxu0 %v1576
        %v1578 = vand.u32 %v1152, 4294901760
        %1579 = vmatpush1.msra.mxu0 %v1578
        %v1580 = vand.u32 %v1161, 4294901760
        %1581 = vmatprep.subr.mxu0 %v1580
        %v1582 = vand.u32 %v1160, 4294901760
        %1583 = vmatpush1.msra.mxu0 %v1582
        %v1584 = vand.u32 %v1129, 4294901760
        %1585 = vmatprep.subr.mxu0 %v1584
        %v1586 = vand.u32 %v1128, 4294901760
        %1587 = vmatpush1.msra.mxu0 %v1586
        %v1588 = vand.u32 %v1169, 4294901760
        %1589 = vmatprep.subr.mxu0 %v1588
        %v1590 = vand.u32 %v1168, 4294901760
        %1591 = vmatpush1.msra.mxu0 %v1590
        %v1592 = vand.u32 %v1177, 4294901760
        %1593 = vmatprep.subr.mxu0 %v1592
        %v1594 = vand.u32 %v1176, 4294901760
        %1595 = vmatpush1.msra.mxu0 %v1594
        %v1596 = vand.u32 %v1185, 4294901760
        %1597 = vmatprep.subr.mxu0 %v1596
        %v1598 = vand.u32 %v1184, 4294901760
        %1599 = vmatpush1.msra.mxu0 %v1598
        %v1600 = vand.u32 %v1193, 4294901760
        %1601 = vmatprep.subr.mxu0 %v1600
        %v1602 = vand.u32 %v1192, 4294901760
        %1603 = vmatpush1.msra.mxu0 %v1602
        %1604 = vmatprep.subr.mxu0 0.0
        %1605 = vmatpush1.msra.mxu0 0.0
        %1606 = vmatprep.subr.mxu0 0.0
        %1607 = vmatpush1.msra.mxu0 0.0
        %1608 = vmatprep.subr.mxu0 0.0
        %1609 = vmatpush1.msra.mxu0 0.0
        %1610 = vmatprep.subr.mxu0 0.0
        %1611 = vmatpush1.msra.mxu0 0.0
        %1612 = vmatprep.subr.mxu0 0.0
        %1613 = vmatpush1.msra.mxu0 0.0
        %1614 = vmatprep.subr.mxu0 0.0
        %1615 = vmatpush1.msra.mxu0 0.0
        %1616 = vmatprep.subr.mxu0 0.0
        %1617 = vmatpush1.msra.mxu0 0.0
        %1618 = vmatprep.subr.mxu0 0.0
        %1619 = vmatpush1.msra.mxu0 0.0
        %1620 = vmatprep.subr.mxu0 0.0
        %1621 = vmatpush1.msra.mxu0 0.0
        %1622 = vmatprep.subr.mxu0 0.0
        %1623 = vmatpush1.msra.mxu0 0.0
        %1624 = vmatprep.subr.mxu0 0.0
        %1625 = vmatpush1.msra.mxu0 0.0
        %1626 = vmatprep.subr.mxu0 0.0
        %1627 = vmatpush1.msra.mxu0 0.0
        %1628 = vmatprep.subr.mxu0 0.0
        %1629 = vmatpush1.msra.mxu0 0.0
        %1630 = vmatprep.subr.mxu0 0.0
        %1631 = vmatpush1.msra.mxu0 0.0
        %1632 = vmatprep.subr.mxu0 0.0
        %1633 = vmatpush1.msra.mxu0 0.0
        %1634 = vmatprep.subr.mxu0 0.0
        %1635 = vmatpush1.msra.mxu0 0.0
        %1636 = vmatprep.subr.mxu0 0.0
        %1637 = vmatpush1.msra.mxu0 0.0
        %1638 = vmatprep.subr.mxu0 0.0
        %1639 = vmatpush1.msra.mxu0 0.0
        %1640 = vmatprep.subr.mxu0 0.0
        %1641 = vmatpush1.msra.mxu0 0.0
        %1642 = vmatprep.subr.mxu0 0.0
        %1643 = vmatpush1.msra.mxu0 0.0
        %1644 = vmatprep.subr.mxu0 0.0
        %1645 = vmatpush1.msra.mxu0 0.0
        %1646 = vmatprep.subr.mxu0 0.0
        %1647 = vmatpush1.msra.mxu0 0.0
        %1648 = vmatprep.subr.mxu0 0.0
        %1649 = vmatpush1.msra.mxu0 0.0
        %1650 = vmatprep.mubr.f32.mxu0 0.0
        %v1651 = vand.u32 %v1201, 4294901760
        %v1652 = vsub.f32 %v1201, %v1651
        %v1653 = vand.u32 %v1652, 4294901760
        %1654 = vmatmul.mubr.f32.gmra.mrb[0].mxu0 %v1653
        %v1655 = vpop.f32.mrb[0].mxu0
        %v1656 = vadd.f32 %v1564, %v1655
        %v1657 = vpop.f32.mrb[0].mxu0
        %v1658 = vadd.f32 %v1566, %v1657
        %1659 = vdwg.mxu0
        %v1660 = vand.u32 %v1137, 4294901760
        %v1661 = vsub.f32 %v1137, %v1660
        %v1662 = vand.u32 %v1661, 4294901760
        %1663 = vmatprep.subr.mxu0 %v1662
        %v1664 = vand.u32 %v1136, 4294901760
        %v1665 = vsub.f32 %v1136, %v1664
        %v1666 = vand.u32 %v1665, 4294901760
        %1667 = vmatpush1.msra.mxu0 %v1666
        %v1668 = vand.u32 %v1145, 4294901760
        %v1669 = vsub.f32 %v1145, %v1668
        %v1670 = vand.u32 %v1669, 4294901760
        %1671 = vmatprep.subr.mxu0 %v1670
        %v1672 = vand.u32 %v1144, 4294901760
        %v1673 = vsub.f32 %v1144, %v1672
        %v1674 = vand.u32 %v1673, 4294901760
        %1675 = vmatpush1.msra.mxu0 %v1674
        %v1676 = vand.u32 %v1153, 4294901760
        %v1677 = vsub.f32 %v1153, %v1676
        %v1678 = vand.u32 %v1677, 4294901760
        %1679 = vmatprep.subr.mxu0 %v1678
        %v1680 = vand.u32 %v1152, 4294901760
        %v1681 = vsub.f32 %v1152, %v1680
        %v1682 = vand.u32 %v1681, 4294901760
        %1683 = vmatpush1.msra.mxu0 %v1682
        %v1684 = vand.u32 %v1161, 4294901760
        %v1685 = vsub.f32 %v1161, %v1684
        %v1686 = vand.u32 %v1685, 4294901760
        %1687 = vmatprep.subr.mxu0 %v1686
        %v1688 = vand.u32 %v1160, 4294901760
        %v1689 = vsub.f32 %v1160, %v1688
        %v1690 = vand.u32 %v1689, 4294901760
        %1691 = vmatpush1.msra.mxu0 %v1690
        %v1692 = vand.u32 %v1129, 4294901760
        %v1693 = vsub.f32 %v1129, %v1692
        %v1694 = vand.u32 %v1693, 4294901760
        %1695 = vmatprep.subr.mxu0 %v1694
        %v1696 = vand.u32 %v1128, 4294901760
        %v1697 = vsub.f32 %v1128, %v1696
        %v1698 = vand.u32 %v1697, 4294901760
        %1699 = vmatpush1.msra.mxu0 %v1698
        %v1700 = vand.u32 %v1169, 4294901760
        %v1701 = vsub.f32 %v1169, %v1700
        %v1702 = vand.u32 %v1701, 4294901760
        %1703 = vmatprep.subr.mxu0 %v1702
        %v1704 = vand.u32 %v1168, 4294901760
        %v1705 = vsub.f32 %v1168, %v1704
        %v1706 = vand.u32 %v1705, 4294901760
        %1707 = vmatpush1.msra.mxu0 %v1706
        %v1708 = vand.u32 %v1177, 4294901760
        %v1709 = vsub.f32 %v1177, %v1708
        %v1710 = vand.u32 %v1709, 4294901760
        %1711 = vmatprep.subr.mxu0 %v1710
        %v1712 = vand.u32 %v1176, 4294901760
        %v1713 = vsub.f32 %v1176, %v1712
        %v1714 = vand.u32 %v1713, 4294901760
        %1715 = vmatpush1.msra.mxu0 %v1714
        %v1716 = vand.u32 %v1185, 4294901760
        %v1717 = vsub.f32 %v1185, %v1716
        %v1718 = vand.u32 %v1717, 4294901760
        %1719 = vmatprep.subr.mxu0 %v1718
        %v1720 = vand.u32 %v1184, 4294901760
        %v1721 = vsub.f32 %v1184, %v1720
        %v1722 = vand.u32 %v1721, 4294901760
        %1723 = vmatpush1.msra.mxu0 %v1722
        %v1724 = vand.u32 %v1193, 4294901760
        %v1725 = vsub.f32 %v1193, %v1724
        %v1726 = vand.u32 %v1725, 4294901760
        %1727 = vmatprep.subr.mxu0 %v1726
        %v1728 = vand.u32 %v1192, 4294901760
        %v1729 = vsub.f32 %v1192, %v1728
        %v1730 = vand.u32 %v1729, 4294901760
        %1731 = vmatpush1.msra.mxu0 %v1730
        %1732 = vmatprep.subr.mxu0 0.0
        %1733 = vmatpush1.msra.mxu0 0.0
        %1734 = vmatprep.subr.mxu0 0.0
        %1735 = vmatpush1.msra.mxu0 0.0
        %1736 = vmatprep.subr.mxu0 0.0
        %1737 = vmatpush1.msra.mxu0 0.0
        %1738 = vmatprep.subr.mxu0 0.0
        %1739 = vmatpush1.msra.mxu0 0.0
        %1740 = vmatprep.subr.mxu0 0.0
        %1741 = vmatpush1.msra.mxu0 0.0
        %1742 = vmatprep.subr.mxu0 0.0
        %1743 = vmatpush1.msra.mxu0 0.0
        %1744 = vmatprep.subr.mxu0 0.0
        %1745 = vmatpush1.msra.mxu0 0.0
        %1746 = vmatprep.subr.mxu0 0.0
        %1747 = vmatpush1.msra.mxu0 0.0
        %1748 = vmatprep.subr.mxu0 0.0
        %1749 = vmatpush1.msra.mxu0 0.0
        %1750 = vmatprep.subr.mxu0 0.0
        %1751 = vmatpush1.msra.mxu0 0.0
        %1752 = vmatprep.subr.mxu0 0.0
        %1753 = vmatpush1.msra.mxu0 0.0
        %1754 = vmatprep.subr.mxu0 0.0
        %1755 = vmatpush1.msra.mxu0 0.0
        %1756 = vmatprep.subr.mxu0 0.0
        %1757 = vmatpush1.msra.mxu0 0.0
        %1758 = vmatprep.subr.mxu0 0.0
        %1759 = vmatpush1.msra.mxu0 0.0
        %1760 = vmatprep.subr.mxu0 0.0
        %1761 = vmatpush1.msra.mxu0 0.0
        %1762 = vmatprep.subr.mxu0 0.0
        %1763 = vmatpush1.msra.mxu0 0.0
        %1764 = vmatprep.subr.mxu0 0.0
        %1765 = vmatpush1.msra.mxu0 0.0
        %1766 = vmatprep.subr.mxu0 0.0
        %1767 = vmatpush1.msra.mxu0 0.0
        %1768 = vmatprep.subr.mxu0 0.0
        %1769 = vmatpush1.msra.mxu0 0.0
        %1770 = vmatprep.subr.mxu0 0.0
        %1771 = vmatpush1.msra.mxu0 0.0
        %1772 = vmatprep.subr.mxu0 0.0
        %1773 = vmatpush1.msra.mxu0 0.0
        %1774 = vmatprep.subr.mxu0 0.0
        %1775 = vmatpush1.msra.mxu0 0.0
        %1776 = vmatprep.subr.mxu0 0.0
        %1777 = vmatpush1.msra.mxu0 0.0
        %1778 = vmatprep.mubr.f32.mxu0 0.0
        %v1779 = vand.u32 %v1201, 4294901760
        %1780 = vmatmul.mubr.f32.gmra.mrb[0].mxu0 %v1779
        %v1781 = vpop.f32.mrb[0].mxu0
        %v1782 = vadd.f32 %v1656, %v1781
        %v1783 = vpop.f32.mrb[0].mxu0
        %v1784 = vadd.f32 %v1658, %v1783
        %1785 = vdwg.mxu0
        %v1786 = vand.u32 %v1137, 4294901760
        %1787 = vmatprep.subr.mxu0 %v1786
        %v1788 = vand.u32 %v1136, 4294901760
        %1789 = vmatpush1.msra.mxu0 %v1788
        %v1790 = vand.u32 %v1145, 4294901760
        %1791 = vmatprep.subr.mxu0 %v1790
        %v1792 = vand.u32 %v1144, 4294901760
        %1793 = vmatpush1.msra.mxu0 %v1792
        %v1794 = vand.u32 %v1153, 4294901760
        %1795 = vmatprep.subr.mxu0 %v1794
        %v1796 = vand.u32 %v1152, 4294901760
        %1797 = vmatpush1.msra.mxu0 %v1796
        %v1798 = vand.u32 %v1161, 4294901760
        %1799 = vmatprep.subr.mxu0 %v1798
        %v1800 = vand.u32 %v1160, 4294901760
        %1801 = vmatpush1.msra.mxu0 %v1800
        %v1802 = vand.u32 %v1129, 4294901760
        %1803 = vmatprep.subr.mxu0 %v1802
        %v1804 = vand.u32 %v1128, 4294901760
        %1805 = vmatpush1.msra.mxu0 %v1804
        %v1806 = vand.u32 %v1169, 4294901760
        %1807 = vmatprep.subr.mxu0 %v1806
        %v1808 = vand.u32 %v1168, 4294901760
        %1809 = vmatpush1.msra.mxu0 %v1808
        %v1810 = vand.u32 %v1177, 4294901760
        %1811 = vmatprep.subr.mxu0 %v1810
        %v1812 = vand.u32 %v1176, 4294901760
        %1813 = vmatpush1.msra.mxu0 %v1812
        %v1814 = vand.u32 %v1185, 4294901760
        %1815 = vmatprep.subr.mxu0 %v1814
        %v1816 = vand.u32 %v1184, 4294901760
        %1817 = vmatpush1.msra.mxu0 %v1816
        %v1818 = vand.u32 %v1193, 4294901760
        %1819 = vmatprep.subr.mxu0 %v1818
        %v1820 = vand.u32 %v1192, 4294901760
        %1821 = vmatpush1.msra.mxu0 %v1820
        %1822 = vmatprep.subr.mxu0 0.0
        %1823 = vmatpush1.msra.mxu0 0.0
        %1824 = vmatprep.subr.mxu0 0.0
        %1825 = vmatpush1.msra.mxu0 0.0
        %1826 = vmatprep.subr.mxu0 0.0
        %1827 = vmatpush1.msra.mxu0 0.0
        %1828 = vmatprep.subr.mxu0 0.0
        %1829 = vmatpush1.msra.mxu0 0.0
        %1830 = vmatprep.subr.mxu0 0.0
        %1831 = vmatpush1.msra.mxu0 0.0
        %1832 = vmatprep.subr.mxu0 0.0
        %1833 = vmatpush1.msra.mxu0 0.0
        %1834 = vmatprep.subr.mxu0 0.0
        %1835 = vmatpush1.msra.mxu0 0.0
        %1836 = vmatprep.subr.mxu0 0.0
        %1837 = vmatpush1.msra.mxu0 0.0
        %1838 = vmatprep.subr.mxu0 0.0
        %1839 = vmatpush1.msra.mxu0 0.0
        %1840 = vmatprep.subr.mxu0 0.0
        %1841 = vmatpush1.msra.mxu0 0.0
        %1842 = vmatprep.subr.mxu0 0.0
        %1843 = vmatpush1.msra.mxu0 0.0
        %1844 = vmatprep.subr.mxu0 0.0
        %1845 = vmatpush1.msra.mxu0 0.0
        %1846 = vmatprep.subr.mxu0 0.0
        %1847 = vmatpush1.msra.mxu0 0.0
        %1848 = vmatprep.subr.mxu0 0.0
        %1849 = vmatpush1.msra.mxu0 0.0
        %1850 = vmatprep.subr.mxu0 0.0
        %1851 = vmatpush1.msra.mxu0 0.0
        %1852 = vmatprep.subr.mxu0 0.0
        %1853 = vmatpush1.msra.mxu0 0.0
        %1854 = vmatprep.subr.mxu0 0.0
        %1855 = vmatpush1.msra.mxu0 0.0
        %1856 = vmatprep.subr.mxu0 0.0
        %1857 = vmatpush1.msra.mxu0 0.0
        %1858 = vmatprep.subr.mxu0 0.0
        %1859 = vmatpush1.msra.mxu0 0.0
        %1860 = vmatprep.subr.mxu0 0.0
        %1861 = vmatpush1.msra.mxu0 0.0
        %1862 = vmatprep.subr.mxu0 0.0
        %1863 = vmatpush1.msra.mxu0 0.0
        %1864 = vmatprep.subr.mxu0 0.0
        %1865 = vmatpush1.msra.mxu0 0.0
        %1866 = vmatprep.subr.mxu0 0.0
        %1867 = vmatpush1.msra.mxu0 0.0
        %1868 = vmatprep.mubr.f32.mxu0 0.0
        %v1869 = vand.u32 %v1201, 4294901760
        %1870 = vmatmul.mubr.f32.gmra.mrb[0].mxu0 %v1869
        %v1871 = vpop.f32.mrb[0].mxu0
        %v1872 = vadd.f32 %v1782, %v1871
        %v1873 = vpop.f32.mrb[0].mxu0
        %v1874 = vadd.f32 %v1784, %v1873
        %1875 = vdwg.mxu0
        %v1876 = vmul.f32 %v1872, 0.1
        %v1877 = vmul.f32 %v1874, 0.1
        %v1878 = vmax.f32 %v1872, %v1876
        %v1879 = vmax.f32 %v1874, %v1877
        %1880 = vrot.lane.b32.xlu0 %v1878, 17
        %v1881 = vpop.permute.xlu0 %1880
        %1882 = vrot.lane.b32.xlu0 %v1879, 17
        %v1883 = vpop.permute.xlu0 %1882
        %v1884 = vsel %vm353, %v1881, %v1883
        %v1885 = vsel %vm353, %v1883, %v1881
        %v1886 = vmul.f32 %v1885, %v360
        %v1887 = vmul.f32 %v1884, %v364
        %1888 = vrot.lane.b32.xlu0 %v1878, 16
        %v1889 = vpop.permute.xlu0 %1888
        %1890 = vrot.lane.b32.xlu0 %v1879, 16
        %v1891 = vpop.permute.xlu0 %1890
        %v1892 = vsel %vm373, %v1889, %v1891
        %v1893 = vsel %vm373, %v1891, %v1889
        %v1894 = vmul.f32 %v1893, %v380
        %v1895 = vmul.f32 %v1892, %v384
        %1896 = vrot.lane.b32.xlu0 %v1878, 15
        %v1897 = vpop.permute.xlu0 %1896
        %1898 = vrot.lane.b32.xlu0 %v1879, 15
        %v1899 = vpop.permute.xlu0 %1898
        %v1900 = vsel %vm393, %v1897, %v1899
        %v1901 = vsel %vm393, %v1899, %v1897
        %v1902 = vmul.f32 %v1901, %v400
        %v1903 = vmul.f32 %v1900, %v404
        %1904 = vrot.lane.b32.xlu0 %v1878, 1
        %v1905 = vpop.permute.xlu0 %1904
        %1906 = vrot.lane.b32.xlu0 %v1879, 1
        %v1907 = vpop.permute.xlu0 %1906
        %v1908 = vsel %vm413, %v1905, %v1907
        %v1909 = vsel %vm413, %v1907, %v1905
        %v1910 = vmul.f32 %v1909, %v420
        %v1911 = vmul.f32 %v1908, %v424
        %1912 = vrot.lane.b32.xlu0 %v1878, 127
        %v1913 = vpop.permute.xlu0 %1912
        %1914 = vrot.lane.b32.xlu0 %v1879, 127
        %v1915 = vpop.permute.xlu0 %1914
        %v1916 = vsel %vm433, %v1913, %v1915
        %v1917 = vsel %vm433, %v1915, %v1913
        %v1918 = vmul.f32 %v1916, %v440
        %v1919 = vmul.f32 %v1917, %v444
        %1920 = vrot.lane.b32.xlu0 %v1878, 113
        %v1921 = vpop.permute.xlu0 %1920
        %1922 = vrot.lane.b32.xlu0 %v1879, 113
        %v1923 = vpop.permute.xlu0 %1922
        %v1924 = vsel %vm453, %v1921, %v1923
        %v1925 = vsel %vm453, %v1923, %v1921
        %v1926 = vmul.f32 %v1924, %v460
        %v1927 = vmul.f32 %v1925, %v464
        %1928 = vrot.lane.b32.xlu0 %v1878, 112
        %v1929 = vpop.permute.xlu0 %1928
        %1930 = vrot.lane.b32.xlu0 %v1879, 112
        %v1931 = vpop.permute.xlu0 %1930
        %v1932 = vsel %vm473, %v1929, %v1931
        %v1933 = vsel %vm473, %v1931, %v1929
        %v1934 = vmul.f32 %v1932, %v480
        %v1935 = vmul.f32 %v1933, %v484
        %1936 = vrot.lane.b32.xlu0 %v1878, 111
        %v1937 = vpop.permute.xlu0 %1936
        %1938 = vrot.lane.b32.xlu0 %v1879, 111
        %v1939 = vpop.permute.xlu0 %1938
        %v1940 = vsel %vm493, %v1937, %v1939
        %v1941 = vsel %vm493, %v1939, %v1937
        %v1942 = vmul.f32 %v1940, %v500
        %v1943 = vmul.f32 %v1941, %v504
        %1945 = vset.pattern.permute.xlu0 0
        %1946 = vperm.xlu0 %1945, %v327
        %v1947 = vpop.permute.xlu0 %1946
        %v1950 = vsel %vm1199, %v324, 0
        %v1952 = vand.u32 %v1887, 4294901760
        %1953 = vmatprep.subr.mxu0 %v1952
        %v1954 = vand.u32 %v1886, 4294901760
        %1955 = vmatpush1.msra.mxu0 %v1954
        %v1956 = vand.u32 %v1895, 4294901760
        %1957 = vmatprep.subr.mxu0 %v1956
        %v1958 = vand.u32 %v1894, 4294901760
        %1959 = vmatpush1.msra.mxu0 %v1958
        %v1960 = vand.u32 %v1903, 4294901760
        %1961 = vmatprep.subr.mxu0 %v1960
        %v1962 = vand.u32 %v1902, 4294901760
        %1963 = vmatpush1.msra.mxu0 %v1962
        %v1964 = vand.u32 %v1911, 4294901760
        %1965 = vmatprep.subr.mxu0 %v1964
        %v1966 = vand.u32 %v1910, 4294901760
        %1967 = vmatpush1.msra.mxu0 %v1966
        %v1968 = vand.u32 %v1879, 4294901760
        %1969 = vmatprep.subr.mxu0 %v1968
        %v1970 = vand.u32 %v1878, 4294901760
        %1971 = vmatpush1.msra.mxu0 %v1970
        %v1972 = vand.u32 %v1919, 4294901760
        %1973 = vmatprep.subr.mxu0 %v1972
        %v1974 = vand.u32 %v1918, 4294901760
        %1975 = vmatpush1.msra.mxu0 %v1974
        %v1976 = vand.u32 %v1927, 4294901760
        %1977 = vmatprep.subr.mxu0 %v1976
        %v1978 = vand.u32 %v1926, 4294901760
        %1979 = vmatpush1.msra.mxu0 %v1978
        %v1980 = vand.u32 %v1935, 4294901760
        %1981 = vmatprep.subr.mxu0 %v1980
        %v1982 = vand.u32 %v1934, 4294901760
        %1983 = vmatpush1.msra.mxu0 %v1982
        %v1984 = vand.u32 %v1943, 4294901760
        %1985 = vmatprep.subr.mxu0 %v1984
        %v1986 = vand.u32 %v1942, 4294901760
        %1987 = vmatpush1.msra.mxu0 %v1986
        %1988 = vmatprep.subr.mxu0 0.0
        %1989 = vmatpush1.msra.mxu0 0.0
        %1990 = vmatprep.subr.mxu0 0.0
        %1991 = vmatpush1.msra.mxu0 0.0
        %1992 = vmatprep.subr.mxu0 0.0
        %1993 = vmatpush1.msra.mxu0 0.0
        %1994 = vmatprep.subr.mxu0 0.0
        %1995 = vmatpush1.msra.mxu0 0.0
        %1996 = vmatprep.subr.mxu0 0.0
        %1997 = vmatpush1.msra.mxu0 0.0
        %1998 = vmatprep.subr.mxu0 0.0
        %1999 = vmatpush1.msra.mxu0 0.0
        %2000 = vmatprep.subr.mxu0 0.0
        %2001 = vmatpush1.msra.mxu0 0.0
        %2002 = vmatprep.subr.mxu0 0.0
        %2003 = vmatpush1.msra.mxu0 0.0
        %2004 = vmatprep.subr.mxu0 0.0
        %2005 = vmatpush1.msra.mxu0 0.0
        %2006 = vmatprep.subr.mxu0 0.0
        %2007 = vmatpush1.msra.mxu0 0.0
        %2008 = vmatprep.subr.mxu0 0.0
        %2009 = vmatpush1.msra.mxu0 0.0
        %2010 = vmatprep.subr.mxu0 0.0
        %2011 = vmatpush1.msra.mxu0 0.0
        %2012 = vmatprep.subr.mxu0 0.0
        %2013 = vmatpush1.msra.mxu0 0.0
        %2014 = vmatprep.subr.mxu0 0.0
        %2015 = vmatpush1.msra.mxu0 0.0
        %2016 = vmatprep.subr.mxu0 0.0
        %2017 = vmatpush1.msra.mxu0 0.0
        %2018 = vmatprep.subr.mxu0 0.0
        %2019 = vmatpush1.msra.mxu0 0.0
        %2020 = vmatprep.subr.mxu0 0.0
        %2021 = vmatpush1.msra.mxu0 0.0
        %2022 = vmatprep.subr.mxu0 0.0
        %2023 = vmatpush1.msra.mxu0 0.0
        %2024 = vmatprep.subr.mxu0 0.0
        %2025 = vmatpush1.msra.mxu0 0.0
        %2026 = vmatprep.subr.mxu0 0.0
        %2027 = vmatpush1.msra.mxu0 0.0
        %2028 = vmatprep.subr.mxu0 0.0
        %2029 = vmatpush1.msra.mxu0 0.0
        %2030 = vmatprep.subr.mxu0 0.0
        %2031 = vmatpush1.msra.mxu0 0.0
        %2032 = vmatprep.subr.mxu0 0.0
        %2033 = vmatpush1.msra.mxu0 0.0
        %2034 = vmatprep.mubr.f32.mxu0 0.0
        %v2035 = vand.u32 %v1950, 4294901760
        %v2036 = vsub.f32 %v1950, %v2035
        %v2037 = vand.u32 %v2036, 4294901760
        %v2038 = vsub.f32 %v2036, %v2037
        %v2039 = vand.u32 %v2038, 4294901760
        %2040 = vmatmul.mubr.f32.gmra.mrb[0].mxu0 %v2039
        %v2041 = vpop.f32.mrb[0].mxu0
        %v2042 = vadd.f32 %v1947, %v2041
        %v2043 = vpop.f32.mrb[0].mxu0
        %v2044 = vadd.f32 %v1947, %v2043
        %2045 = vdwg.mxu0
        %v2046 = vand.u32 %v1887, 4294901760
        %v2047 = vsub.f32 %v1887, %v2046
        %v2048 = vand.u32 %v2047, 4294901760
        %v2049 = vsub.f32 %v2047, %v2048
        %v2050 = vand.u32 %v2049, 4294901760
        %2051 = vmatprep.subr.mxu0 %v2050
        %v2052 = vand.u32 %v1886, 4294901760
        %v2053 = vsub.f32 %v1886, %v2052
        %v2054 = vand.u32 %v2053, 4294901760
        %v2055 = vsub.f32 %v2053, %v2054
        %v2056 = vand.u32 %v2055, 4294901760
        %2057 = vmatpush1.msra.mxu0 %v2056
        %v2058 = vand.u32 %v1895, 4294901760
        %v2059 = vsub.f32 %v1895, %v2058
        %v2060 = vand.u32 %v2059, 4294901760
        %v2061 = vsub.f32 %v2059, %v2060
        %v2062 = vand.u32 %v2061, 4294901760
        %2063 = vmatprep.subr.mxu0 %v2062
        %v2064 = vand.u32 %v1894, 4294901760
        %v2065 = vsub.f32 %v1894, %v2064
        %v2066 = vand.u32 %v2065, 4294901760
        %v2067 = vsub.f32 %v2065, %v2066
        %v2068 = vand.u32 %v2067, 4294901760
        %2069 = vmatpush1.msra.mxu0 %v2068
        %v2070 = vand.u32 %v1903, 4294901760
        %v2071 = vsub.f32 %v1903, %v2070
        %v2072 = vand.u32 %v2071, 4294901760
        %v2073 = vsub.f32 %v2071, %v2072
        %v2074 = vand.u32 %v2073, 4294901760
        %2075 = vmatprep.subr.mxu0 %v2074
        %v2076 = vand.u32 %v1902, 4294901760
        %v2077 = vsub.f32 %v1902, %v2076
        %v2078 = vand.u32 %v2077, 4294901760
        %v2079 = vsub.f32 %v2077, %v2078
        %v2080 = vand.u32 %v2079, 4294901760
        %2081 = vmatpush1.msra.mxu0 %v2080
        %v2082 = vand.u32 %v1911, 4294901760
        %v2083 = vsub.f32 %v1911, %v2082
        %v2084 = vand.u32 %v2083, 4294901760
        %v2085 = vsub.f32 %v2083, %v2084
        %v2086 = vand.u32 %v2085, 4294901760
        %2087 = vmatprep.subr.mxu0 %v2086
        %v2088 = vand.u32 %v1910, 4294901760
        %v2089 = vsub.f32 %v1910, %v2088
        %v2090 = vand.u32 %v2089, 4294901760
        %v2091 = vsub.f32 %v2089, %v2090
        %v2092 = vand.u32 %v2091, 4294901760
        %2093 = vmatpush1.msra.mxu0 %v2092
        %v2094 = vand.u32 %v1879, 4294901760
        %v2095 = vsub.f32 %v1879, %v2094
        %v2096 = vand.u32 %v2095, 4294901760
        %v2097 = vsub.f32 %v2095, %v2096
        %v2098 = vand.u32 %v2097, 4294901760
        %2099 = vmatprep.subr.mxu0 %v2098
        %v2100 = vand.u32 %v1878, 4294901760
        %v2101 = vsub.f32 %v1878, %v2100
        %v2102 = vand.u32 %v2101, 4294901760
        %v2103 = vsub.f32 %v2101, %v2102
        %v2104 = vand.u32 %v2103, 4294901760
        %2105 = vmatpush1.msra.mxu0 %v2104
        %v2106 = vand.u32 %v1919, 4294901760
        %v2107 = vsub.f32 %v1919, %v2106
        %v2108 = vand.u32 %v2107, 4294901760
        %v2109 = vsub.f32 %v2107, %v2108
        %v2110 = vand.u32 %v2109, 4294901760
        %2111 = vmatprep.subr.mxu0 %v2110
        %v2112 = vand.u32 %v1918, 4294901760
        %v2113 = vsub.f32 %v1918, %v2112
        %v2114 = vand.u32 %v2113, 4294901760
        %v2115 = vsub.f32 %v2113, %v2114
        %v2116 = vand.u32 %v2115, 4294901760
        %2117 = vmatpush1.msra.mxu0 %v2116
        %v2118 = vand.u32 %v1927, 4294901760
        %v2119 = vsub.f32 %v1927, %v2118
        %v2120 = vand.u32 %v2119, 4294901760
        %v2121 = vsub.f32 %v2119, %v2120
        %v2122 = vand.u32 %v2121, 4294901760
        %2123 = vmatprep.subr.mxu0 %v2122
        %v2124 = vand.u32 %v1926, 4294901760
        %v2125 = vsub.f32 %v1926, %v2124
        %v2126 = vand.u32 %v2125, 4294901760
        %v2127 = vsub.f32 %v2125, %v2126
        %v2128 = vand.u32 %v2127, 4294901760
        %2129 = vmatpush1.msra.mxu0 %v2128
        %v2130 = vand.u32 %v1935, 4294901760
        %v2131 = vsub.f32 %v1935, %v2130
        %v2132 = vand.u32 %v2131, 4294901760
        %v2133 = vsub.f32 %v2131, %v2132
        %v2134 = vand.u32 %v2133, 4294901760
        %2135 = vmatprep.subr.mxu0 %v2134
        %v2136 = vand.u32 %v1934, 4294901760
        %v2137 = vsub.f32 %v1934, %v2136
        %v2138 = vand.u32 %v2137, 4294901760
        %v2139 = vsub.f32 %v2137, %v2138
        %v2140 = vand.u32 %v2139, 4294901760
        %2141 = vmatpush1.msra.mxu0 %v2140
        %v2142 = vand.u32 %v1943, 4294901760
        %v2143 = vsub.f32 %v1943, %v2142
        %v2144 = vand.u32 %v2143, 4294901760
        %v2145 = vsub.f32 %v2143, %v2144
        %v2146 = vand.u32 %v2145, 4294901760
        %2147 = vmatprep.subr.mxu0 %v2146
        %v2148 = vand.u32 %v1942, 4294901760
        %v2149 = vsub.f32 %v1942, %v2148
        %v2150 = vand.u32 %v2149, 4294901760
        %v2151 = vsub.f32 %v2149, %v2150
        %v2152 = vand.u32 %v2151, 4294901760
        %2153 = vmatpush1.msra.mxu0 %v2152
        %2154 = vmatprep.subr.mxu0 0.0
        %2155 = vmatpush1.msra.mxu0 0.0
        %2156 = vmatprep.subr.mxu0 0.0
        %2157 = vmatpush1.msra.mxu0 0.0
        %2158 = vmatprep.subr.mxu0 0.0
        %2159 = vmatpush1.msra.mxu0 0.0
        %2160 = vmatprep.subr.mxu0 0.0
        %2161 = vmatpush1.msra.mxu0 0.0
        %2162 = vmatprep.subr.mxu0 0.0
        %2163 = vmatpush1.msra.mxu0 0.0
        %2164 = vmatprep.subr.mxu0 0.0
        %2165 = vmatpush1.msra.mxu0 0.0
        %2166 = vmatprep.subr.mxu0 0.0
        %2167 = vmatpush1.msra.mxu0 0.0
        %2168 = vmatprep.subr.mxu0 0.0
        %2169 = vmatpush1.msra.mxu0 0.0
        %2170 = vmatprep.subr.mxu0 0.0
        %2171 = vmatpush1.msra.mxu0 0.0
        %2172 = vmatprep.subr.mxu0 0.0
        %2173 = vmatpush1.msra.mxu0 0.0
        %2174 = vmatprep.subr.mxu0 0.0
        %2175 = vmatpush1.msra.mxu0 0.0
        %2176 = vmatprep.subr.mxu0 0.0
        %2177 = vmatpush1.msra.mxu0 0.0
        %2178 = vmatprep.subr.mxu0 0.0
        %2179 = vmatpush1.msra.mxu0 0.0
        %2180 = vmatprep.subr.mxu0 0.0
        %2181 = vmatpush1.msra.mxu0 0.0
        %2182 = vmatprep.subr.mxu0 0.0
        %2183 = vmatpush1.msra.mxu0 0.0
        %2184 = vmatprep.subr.mxu0 0.0
        %2185 = vmatpush1.msra.mxu0 0.0
        %2186 = vmatprep.subr.mxu0 0.0
        %2187 = vmatpush1.msra.mxu0 0.0
        %2188 = vmatprep.subr.mxu0 0.0
        %2189 = vmatpush1.msra.mxu0 0.0
        %2190 = vmatprep.subr.mxu0 0.0
        %2191 = vmatpush1.msra.mxu0 0.0
        %2192 = vmatprep.subr.mxu0 0.0
        %2193 = vmatpush1.msra.mxu0 0.0
        %2194 = vmatprep.subr.mxu0 0.0
        %2195 = vmatpush1.msra.mxu0 0.0
        %2196 = vmatprep.subr.mxu0 0.0
        %2197 = vmatpush1.msra.mxu0 0.0
        %2198 = vmatprep.subr.mxu0 0.0
        %2199 = vmatpush1.msra.mxu0 0.0
        %2200 = vmatprep.mubr.f32.mxu0 0.0
        %v2201 = vand.u32 %v1950, 4294901760
        %2202 = vmatmul.mubr.f32.gmra.mrb[0].mxu0 %v2201
        %v2203 = vpop.f32.mrb[0].mxu0
        %v2204 = vadd.f32 %v2042, %v2203
        %v2205 = vpop.f32.mrb[0].mxu0
        %v2206 = vadd.f32 %v2044, %v2205
        %2207 = vdwg.mxu0
        %v2208 = vand.u32 %v1887, 4294901760
        %v2209 = vsub.f32 %v1887, %v2208
        %2210 = vmatprep.subr.mxu0 %v2209
        %v2211 = vand.u32 %v1886, 4294901760
        %v2212 = vsub.f32 %v1886, %v2211
        %2213 = vmatpush1.msra.mxu0 %v2212
        %v2214 = vand.u32 %v1895, 4294901760
        %v2215 = vsub.f32 %v1895, %v2214
        %2216 = vmatprep.subr.mxu0 %v2215
        %v2217 = vand.u32 %v1894, 4294901760
        %v2218 = vsub.f32 %v1894, %v2217
        %2219 = vmatpush1.msra.mxu0 %v2218
        %v2220 = vand.u32 %v1903, 4294901760
        %v2221 = vsub.f32 %v1903, %v2220
        %2222 = vmatprep.subr.mxu0 %v2221
        %v2223 = vand.u32 %v1902, 4294901760
        %v2224 = vsub.f32 %v1902, %v2223
        %2225 = vmatpush1.msra.mxu0 %v2224
        %v2226 = vand.u32 %v1911, 4294901760
        %v2227 = vsub.f32 %v1911, %v2226
        %2228 = vmatprep.subr.mxu0 %v2227
        %v2229 = vand.u32 %v1910, 4294901760
        %v2230 = vsub.f32 %v1910, %v2229
        %2231 = vmatpush1.msra.mxu0 %v2230
        %v2232 = vand.u32 %v1879, 4294901760
        %v2233 = vsub.f32 %v1879, %v2232
        %2234 = vmatprep.subr.mxu0 %v2233
        %v2235 = vand.u32 %v1878, 4294901760
        %v2236 = vsub.f32 %v1878, %v2235
        %2237 = vmatpush1.msra.mxu0 %v2236
        %v2238 = vand.u32 %v1919, 4294901760
        %v2239 = vsub.f32 %v1919, %v2238
        %2240 = vmatprep.subr.mxu0 %v2239
        %v2241 = vand.u32 %v1918, 4294901760
        %v2242 = vsub.f32 %v1918, %v2241
        %2243 = vmatpush1.msra.mxu0 %v2242
        %v2244 = vand.u32 %v1927, 4294901760
        %v2245 = vsub.f32 %v1927, %v2244
        %2246 = vmatprep.subr.mxu0 %v2245
        %v2247 = vand.u32 %v1926, 4294901760
        %v2248 = vsub.f32 %v1926, %v2247
        %2249 = vmatpush1.msra.mxu0 %v2248
        %v2250 = vand.u32 %v1935, 4294901760
        %v2251 = vsub.f32 %v1935, %v2250
        %2252 = vmatprep.subr.mxu0 %v2251
        %v2253 = vand.u32 %v1934, 4294901760
        %v2254 = vsub.f32 %v1934, %v2253
        %2255 = vmatpush1.msra.mxu0 %v2254
        %v2256 = vand.u32 %v1943, 4294901760
        %v2257 = vsub.f32 %v1943, %v2256
        %2258 = vmatprep.subr.mxu0 %v2257
        %v2259 = vand.u32 %v1942, 4294901760
        %v2260 = vsub.f32 %v1942, %v2259
        %2261 = vmatpush1.msra.mxu0 %v2260
        %2262 = vmatprep.subr.mxu0 0.0
        %2263 = vmatpush1.msra.mxu0 0.0
        %2264 = vmatprep.subr.mxu0 0.0
        %2265 = vmatpush1.msra.mxu0 0.0
        %2266 = vmatprep.subr.mxu0 0.0
        %2267 = vmatpush1.msra.mxu0 0.0
        %2268 = vmatprep.subr.mxu0 0.0
        %2269 = vmatpush1.msra.mxu0 0.0
        %2270 = vmatprep.subr.mxu0 0.0
        %2271 = vmatpush1.msra.mxu0 0.0
        %2272 = vmatprep.subr.mxu0 0.0
        %2273 = vmatpush1.msra.mxu0 0.0
        %2274 = vmatprep.subr.mxu0 0.0
        %2275 = vmatpush1.msra.mxu0 0.0
        %2276 = vmatprep.subr.mxu0 0.0
        %2277 = vmatpush1.msra.mxu0 0.0
        %2278 = vmatprep.subr.mxu0 0.0
        %2279 = vmatpush1.msra.mxu0 0.0
        %2280 = vmatprep.subr.mxu0 0.0
        %2281 = vmatpush1.msra.mxu0 0.0
        %2282 = vmatprep.subr.mxu0 0.0
        %2283 = vmatpush1.msra.mxu0 0.0
        %2284 = vmatprep.subr.mxu0 0.0
        %2285 = vmatpush1.msra.mxu0 0.0
        %2286 = vmatprep.subr.mxu0 0.0
        %2287 = vmatpush1.msra.mxu0 0.0
        %2288 = vmatprep.subr.mxu0 0.0
        %2289 = vmatpush1.msra.mxu0 0.0
        %2290 = vmatprep.subr.mxu0 0.0
        %2291 = vmatpush1.msra.mxu0 0.0
        %2292 = vmatprep.subr.mxu0 0.0
        %2293 = vmatpush1.msra.mxu0 0.0
        %2294 = vmatprep.subr.mxu0 0.0
        %2295 = vmatpush1.msra.mxu0 0.0
        %2296 = vmatprep.subr.mxu0 0.0
        %2297 = vmatpush1.msra.mxu0 0.0
        %2298 = vmatprep.subr.mxu0 0.0
        %2299 = vmatpush1.msra.mxu0 0.0
        %2300 = vmatprep.subr.mxu0 0.0
        %2301 = vmatpush1.msra.mxu0 0.0
        %2302 = vmatprep.subr.mxu0 0.0
        %2303 = vmatpush1.msra.mxu0 0.0
        %2304 = vmatprep.subr.mxu0 0.0
        %2305 = vmatpush1.msra.mxu0 0.0
        %2306 = vmatprep.subr.mxu0 0.0
        %2307 = vmatpush1.msra.mxu0 0.0
        %2308 = vmatprep.mubr.f32.mxu0 0.0
        %v2309 = vand.u32 %v1950, 4294901760
        %v2310 = vsub.f32 %v1950, %v2309
        %2311 = vmatmul.mubr.f32.gmra.mrb[0].mxu0 %v2310
        %v2312 = vpop.f32.mrb[0].mxu0
        %v2313 = vadd.f32 %v2204, %v2312
        %v2314 = vpop.f32.mrb[0].mxu0
        %v2315 = vadd.f32 %v2206, %v2314
        %2316 = vdwg.mxu0
        %v2317 = vand.u32 %v1887, 4294901760
        %2318 = vmatprep.subr.mxu0 %v2317
        %v2319 = vand.u32 %v1886, 4294901760
        %2320 = vmatpush1.msra.mxu0 %v2319
        %v2321 = vand.u32 %v1895, 4294901760
        %2322 = vmatprep.subr.mxu0 %v2321
        %v2323 = vand.u32 %v1894, 4294901760
        %2324 = vmatpush1.msra.mxu0 %v2323
        %v2325 = vand.u32 %v1903, 4294901760
        %2326 = vmatprep.subr.mxu0 %v2325
        %v2327 = vand.u32 %v1902, 4294901760
        %2328 = vmatpush1.msra.mxu0 %v2327
        %v2329 = vand.u32 %v1911, 4294901760
        %2330 = vmatprep.subr.mxu0 %v2329
        %v2331 = vand.u32 %v1910, 4294901760
        %2332 = vmatpush1.msra.mxu0 %v2331
        %v2333 = vand.u32 %v1879, 4294901760
        %2334 = vmatprep.subr.mxu0 %v2333
        %v2335 = vand.u32 %v1878, 4294901760
        %2336 = vmatpush1.msra.mxu0 %v2335
        %v2337 = vand.u32 %v1919, 4294901760
        %2338 = vmatprep.subr.mxu0 %v2337
        %v2339 = vand.u32 %v1918, 4294901760
        %2340 = vmatpush1.msra.mxu0 %v2339
        %v2341 = vand.u32 %v1927, 4294901760
        %2342 = vmatprep.subr.mxu0 %v2341
        %v2343 = vand.u32 %v1926, 4294901760
        %2344 = vmatpush1.msra.mxu0 %v2343
        %v2345 = vand.u32 %v1935, 4294901760
        %2346 = vmatprep.subr.mxu0 %v2345
        %v2347 = vand.u32 %v1934, 4294901760
        %2348 = vmatpush1.msra.mxu0 %v2347
        %v2349 = vand.u32 %v1943, 4294901760
        %2350 = vmatprep.subr.mxu0 %v2349
        %v2351 = vand.u32 %v1942, 4294901760
        %2352 = vmatpush1.msra.mxu0 %v2351
        %2353 = vmatprep.subr.mxu0 0.0
        %2354 = vmatpush1.msra.mxu0 0.0
        %2355 = vmatprep.subr.mxu0 0.0
        %2356 = vmatpush1.msra.mxu0 0.0
        %2357 = vmatprep.subr.mxu0 0.0
        %2358 = vmatpush1.msra.mxu0 0.0
        %2359 = vmatprep.subr.mxu0 0.0
        %2360 = vmatpush1.msra.mxu0 0.0
        %2361 = vmatprep.subr.mxu0 0.0
        %2362 = vmatpush1.msra.mxu0 0.0
        %2363 = vmatprep.subr.mxu0 0.0
        %2364 = vmatpush1.msra.mxu0 0.0
        %2365 = vmatprep.subr.mxu0 0.0
        %2366 = vmatpush1.msra.mxu0 0.0
        %2367 = vmatprep.subr.mxu0 0.0
        %2368 = vmatpush1.msra.mxu0 0.0
        %2369 = vmatprep.subr.mxu0 0.0
        %2370 = vmatpush1.msra.mxu0 0.0
        %2371 = vmatprep.subr.mxu0 0.0
        %2372 = vmatpush1.msra.mxu0 0.0
        %2373 = vmatprep.subr.mxu0 0.0
        %2374 = vmatpush1.msra.mxu0 0.0
        %2375 = vmatprep.subr.mxu0 0.0
        %2376 = vmatpush1.msra.mxu0 0.0
        %2377 = vmatprep.subr.mxu0 0.0
        %2378 = vmatpush1.msra.mxu0 0.0
        %2379 = vmatprep.subr.mxu0 0.0
        %2380 = vmatpush1.msra.mxu0 0.0
        %2381 = vmatprep.subr.mxu0 0.0
        %2382 = vmatpush1.msra.mxu0 0.0
        %2383 = vmatprep.subr.mxu0 0.0
        %2384 = vmatpush1.msra.mxu0 0.0
        %2385 = vmatprep.subr.mxu0 0.0
        %2386 = vmatpush1.msra.mxu0 0.0
        %2387 = vmatprep.subr.mxu0 0.0
        %2388 = vmatpush1.msra.mxu0 0.0
        %2389 = vmatprep.subr.mxu0 0.0
        %2390 = vmatpush1.msra.mxu0 0.0
        %2391 = vmatprep.subr.mxu0 0.0
        %2392 = vmatpush1.msra.mxu0 0.0
        %2393 = vmatprep.subr.mxu0 0.0
        %2394 = vmatpush1.msra.mxu0 0.0
        %2395 = vmatprep.subr.mxu0 0.0
        %2396 = vmatpush1.msra.mxu0 0.0
        %2397 = vmatprep.subr.mxu0 0.0
        %2398 = vmatpush1.msra.mxu0 0.0
        %2399 = vmatprep.mubr.f32.mxu0 0.0
        %v2400 = vand.u32 %v1950, 4294901760
        %v2401 = vsub.f32 %v1950, %v2400
        %v2402 = vand.u32 %v2401, 4294901760
        %2403 = vmatmul.mubr.f32.gmra.mrb[0].mxu0 %v2402
        %v2404 = vpop.f32.mrb[0].mxu0
        %v2405 = vadd.f32 %v2313, %v2404
        %v2406 = vpop.f32.mrb[0].mxu0
        %v2407 = vadd.f32 %v2315, %v2406
        %2408 = vdwg.mxu0
        %v2409 = vand.u32 %v1887, 4294901760
        %v2410 = vsub.f32 %v1887, %v2409
        %v2411 = vand.u32 %v2410, 4294901760
        %2412 = vmatprep.subr.mxu0 %v2411
        %v2413 = vand.u32 %v1886, 4294901760
        %v2414 = vsub.f32 %v1886, %v2413
        %v2415 = vand.u32 %v2414, 4294901760
        %2416 = vmatpush1.msra.mxu0 %v2415
        %v2417 = vand.u32 %v1895, 4294901760
        %v2418 = vsub.f32 %v1895, %v2417
        %v2419 = vand.u32 %v2418, 4294901760
        %2420 = vmatprep.subr.mxu0 %v2419
        %v2421 = vand.u32 %v1894, 4294901760
        %v2422 = vsub.f32 %v1894, %v2421
        %v2423 = vand.u32 %v2422, 4294901760
        %2424 = vmatpush1.msra.mxu0 %v2423
        %v2425 = vand.u32 %v1903, 4294901760
        %v2426 = vsub.f32 %v1903, %v2425
        %v2427 = vand.u32 %v2426, 4294901760
        %2428 = vmatprep.subr.mxu0 %v2427
        %v2429 = vand.u32 %v1902, 4294901760
        %v2430 = vsub.f32 %v1902, %v2429
        %v2431 = vand.u32 %v2430, 4294901760
        %2432 = vmatpush1.msra.mxu0 %v2431
        %v2433 = vand.u32 %v1911, 4294901760
        %v2434 = vsub.f32 %v1911, %v2433
        %v2435 = vand.u32 %v2434, 4294901760
        %2436 = vmatprep.subr.mxu0 %v2435
        %v2437 = vand.u32 %v1910, 4294901760
        %v2438 = vsub.f32 %v1910, %v2437
        %v2439 = vand.u32 %v2438, 4294901760
        %2440 = vmatpush1.msra.mxu0 %v2439
        %v2441 = vand.u32 %v1879, 4294901760
        %v2442 = vsub.f32 %v1879, %v2441
        %v2443 = vand.u32 %v2442, 4294901760
        %2444 = vmatprep.subr.mxu0 %v2443
        %v2445 = vand.u32 %v1878, 4294901760
        %v2446 = vsub.f32 %v1878, %v2445
        %v2447 = vand.u32 %v2446, 4294901760
        %2448 = vmatpush1.msra.mxu0 %v2447
        %v2449 = vand.u32 %v1919, 4294901760
        %v2450 = vsub.f32 %v1919, %v2449
        %v2451 = vand.u32 %v2450, 4294901760
        %2452 = vmatprep.subr.mxu0 %v2451
        %v2453 = vand.u32 %v1918, 4294901760
        %v2454 = vsub.f32 %v1918, %v2453
        %v2455 = vand.u32 %v2454, 4294901760
        %2456 = vmatpush1.msra.mxu0 %v2455
        %v2457 = vand.u32 %v1927, 4294901760
        %v2458 = vsub.f32 %v1927, %v2457
        %v2459 = vand.u32 %v2458, 4294901760
        %2460 = vmatprep.subr.mxu0 %v2459
        %v2461 = vand.u32 %v1926, 4294901760
        %v2462 = vsub.f32 %v1926, %v2461
        %v2463 = vand.u32 %v2462, 4294901760
        %2464 = vmatpush1.msra.mxu0 %v2463
        %v2465 = vand.u32 %v1935, 4294901760
        %v2466 = vsub.f32 %v1935, %v2465
        %v2467 = vand.u32 %v2466, 4294901760
        %2468 = vmatprep.subr.mxu0 %v2467
        %v2469 = vand.u32 %v1934, 4294901760
        %v2470 = vsub.f32 %v1934, %v2469
        %v2471 = vand.u32 %v2470, 4294901760
        %2472 = vmatpush1.msra.mxu0 %v2471
        %v2473 = vand.u32 %v1943, 4294901760
        %v2474 = vsub.f32 %v1943, %v2473
        %v2475 = vand.u32 %v2474, 4294901760
        %2476 = vmatprep.subr.mxu0 %v2475
        %v2477 = vand.u32 %v1942, 4294901760
        %v2478 = vsub.f32 %v1942, %v2477
        %v2479 = vand.u32 %v2478, 4294901760
        %2480 = vmatpush1.msra.mxu0 %v2479
        %2481 = vmatprep.subr.mxu0 0.0
        %2482 = vmatpush1.msra.mxu0 0.0
        %2483 = vmatprep.subr.mxu0 0.0
        %2484 = vmatpush1.msra.mxu0 0.0
        %2485 = vmatprep.subr.mxu0 0.0
        %2486 = vmatpush1.msra.mxu0 0.0
        %2487 = vmatprep.subr.mxu0 0.0
        %2488 = vmatpush1.msra.mxu0 0.0
        %2489 = vmatprep.subr.mxu0 0.0
        %2490 = vmatpush1.msra.mxu0 0.0
        %2491 = vmatprep.subr.mxu0 0.0
        %2492 = vmatpush1.msra.mxu0 0.0
        %2493 = vmatprep.subr.mxu0 0.0
        %2494 = vmatpush1.msra.mxu0 0.0
        %2495 = vmatprep.subr.mxu0 0.0
        %2496 = vmatpush1.msra.mxu0 0.0
        %2497 = vmatprep.subr.mxu0 0.0
        %2498 = vmatpush1.msra.mxu0 0.0
        %2499 = vmatprep.subr.mxu0 0.0
        %2500 = vmatpush1.msra.mxu0 0.0
        %2501 = vmatprep.subr.mxu0 0.0
        %2502 = vmatpush1.msra.mxu0 0.0
        %2503 = vmatprep.subr.mxu0 0.0
        %2504 = vmatpush1.msra.mxu0 0.0
        %2505 = vmatprep.subr.mxu0 0.0
        %2506 = vmatpush1.msra.mxu0 0.0
        %2507 = vmatprep.subr.mxu0 0.0
        %2508 = vmatpush1.msra.mxu0 0.0
        %2509 = vmatprep.subr.mxu0 0.0
        %2510 = vmatpush1.msra.mxu0 0.0
        %2511 = vmatprep.subr.mxu0 0.0
        %2512 = vmatpush1.msra.mxu0 0.0
        %2513 = vmatprep.subr.mxu0 0.0
        %2514 = vmatpush1.msra.mxu0 0.0
        %2515 = vmatprep.subr.mxu0 0.0
        %2516 = vmatpush1.msra.mxu0 0.0
        %2517 = vmatprep.subr.mxu0 0.0
        %2518 = vmatpush1.msra.mxu0 0.0
        %2519 = vmatprep.subr.mxu0 0.0
        %2520 = vmatpush1.msra.mxu0 0.0
        %2521 = vmatprep.subr.mxu0 0.0
        %2522 = vmatpush1.msra.mxu0 0.0
        %2523 = vmatprep.subr.mxu0 0.0
        %2524 = vmatpush1.msra.mxu0 0.0
        %2525 = vmatprep.subr.mxu0 0.0
        %2526 = vmatpush1.msra.mxu0 0.0
        %2527 = vmatprep.mubr.f32.mxu0 0.0
        %v2528 = vand.u32 %v1950, 4294901760
        %2529 = vmatmul.mubr.f32.gmra.mrb[0].mxu0 %v2528
        %v2530 = vpop.f32.mrb[0].mxu0
        %v2531 = vadd.f32 %v2405, %v2530
        %v2532 = vpop.f32.mrb[0].mxu0
        %v2533 = vadd.f32 %v2407, %v2532
        %2534 = vdwg.mxu0
        %v2535 = vand.u32 %v1887, 4294901760
        %2536 = vmatprep.subr.mxu0 %v2535
        %v2537 = vand.u32 %v1886, 4294901760
        %2538 = vmatpush1.msra.mxu0 %v2537
        %v2539 = vand.u32 %v1895, 4294901760
        %2540 = vmatprep.subr.mxu0 %v2539
        %v2541 = vand.u32 %v1894, 4294901760
        %2542 = vmatpush1.msra.mxu0 %v2541
        %v2543 = vand.u32 %v1903, 4294901760
        %2544 = vmatprep.subr.mxu0 %v2543
        %v2545 = vand.u32 %v1902, 4294901760
        %2546 = vmatpush1.msra.mxu0 %v2545
        %v2547 = vand.u32 %v1911, 4294901760
        %2548 = vmatprep.subr.mxu0 %v2547
        %v2549 = vand.u32 %v1910, 4294901760
        %2550 = vmatpush1.msra.mxu0 %v2549
        %v2551 = vand.u32 %v1879, 4294901760
        %2552 = vmatprep.subr.mxu0 %v2551
        %v2553 = vand.u32 %v1878, 4294901760
        %2554 = vmatpush1.msra.mxu0 %v2553
        %v2555 = vand.u32 %v1919, 4294901760
        %2556 = vmatprep.subr.mxu0 %v2555
        %v2557 = vand.u32 %v1918, 4294901760
        %2558 = vmatpush1.msra.mxu0 %v2557
        %v2559 = vand.u32 %v1927, 4294901760
        %2560 = vmatprep.subr.mxu0 %v2559
        %v2561 = vand.u32 %v1926, 4294901760
        %2562 = vmatpush1.msra.mxu0 %v2561
        %v2563 = vand.u32 %v1935, 4294901760
        %2564 = vmatprep.subr.mxu0 %v2563
        %v2565 = vand.u32 %v1934, 4294901760
        %2566 = vmatpush1.msra.mxu0 %v2565
        %v2567 = vand.u32 %v1943, 4294901760
        %2568 = vmatprep.subr.mxu0 %v2567
        %v2569 = vand.u32 %v1942, 4294901760
        %2570 = vmatpush1.msra.mxu0 %v2569
        %2571 = vmatprep.subr.mxu0 0.0
        %2572 = vmatpush1.msra.mxu0 0.0
        %2573 = vmatprep.subr.mxu0 0.0
        %2574 = vmatpush1.msra.mxu0 0.0
        %2575 = vmatprep.subr.mxu0 0.0
        %2576 = vmatpush1.msra.mxu0 0.0
        %2577 = vmatprep.subr.mxu0 0.0
        %2578 = vmatpush1.msra.mxu0 0.0
        %2579 = vmatprep.subr.mxu0 0.0
        %2580 = vmatpush1.msra.mxu0 0.0
        %2581 = vmatprep.subr.mxu0 0.0
        %2582 = vmatpush1.msra.mxu0 0.0
        %2583 = vmatprep.subr.mxu0 0.0
        %2584 = vmatpush1.msra.mxu0 0.0
        %2585 = vmatprep.subr.mxu0 0.0
        %2586 = vmatpush1.msra.mxu0 0.0
        %2587 = vmatprep.subr.mxu0 0.0
        %2588 = vmatpush1.msra.mxu0 0.0
        %2589 = vmatprep.subr.mxu0 0.0
        %2590 = vmatpush1.msra.mxu0 0.0
        %2591 = vmatprep.subr.mxu0 0.0
        %2592 = vmatpush1.msra.mxu0 0.0
        %2593 = vmatprep.subr.mxu0 0.0
        %2594 = vmatpush1.msra.mxu0 0.0
        %2595 = vmatprep.subr.mxu0 0.0
        %2596 = vmatpush1.msra.mxu0 0.0
        %2597 = vmatprep.subr.mxu0 0.0
        %2598 = vmatpush1.msra.mxu0 0.0
        %2599 = vmatprep.subr.mxu0 0.0
        %2600 = vmatpush1.msra.mxu0 0.0
        %2601 = vmatprep.subr.mxu0 0.0
        %2602 = vmatpush1.msra.mxu0 0.0
        %2603 = vmatprep.subr.mxu0 0.0
        %2604 = vmatpush1.msra.mxu0 0.0
        %2605 = vmatprep.subr.mxu0 0.0
        %2606 = vmatpush1.msra.mxu0 0.0
        %2607 = vmatprep.subr.mxu0 0.0
        %2608 = vmatpush1.msra.mxu0 0.0
        %2609 = vmatprep.subr.mxu0 0.0
        %2610 = vmatpush1.msra.mxu0 0.0
        %2611 = vmatprep.subr.mxu0 0.0
        %2612 = vmatpush1.msra.mxu0 0.0
        %2613 = vmatprep.subr.mxu0 0.0
        %2614 = vmatpush1.msra.mxu0 0.0
        %2615 = vmatprep.subr.mxu0 0.0
        %2616 = vmatpush1.msra.mxu0 0.0
        %2617 = vmatprep.mubr.f32.mxu0 0.0
        %v2618 = vand.u32 %v1950, 4294901760
        %2619 = vmatmul.mubr.f32.gmra.mrb[0].mxu0 %v2618
        %v2620 = vpop.f32.mrb[0].mxu0
        %v2621 = vadd.f32 %v2531, %v2620
        %v2622 = vpop.f32.mrb[0].mxu0
        %v2623 = vadd.f32 %v2533, %v2622
        %2624 = vdwg.mxu0
        %v2625 = vmul.f32 %v2621, 0.1
        %v2626 = vmul.f32 %v2623, 0.1
        %v2627 = vmax.f32 %v2621, %v2625
        %v2628 = vmax.f32 %v2623, %v2626
        %2629 = vst [vmem:[%s321] sm:$0xff] %v2627
        %2630 = vst [vmem:[%s321 + $0x8] sm:$0xff] %v2628
        %s2631 = sand.u32 %s206, 1
        %s2632 = scalar_lea.sflag [#allocation4], %s2631
        %s2633 = sand.u32 %s206, 1
        %s2634 = smul.addr %s2633, 16
        %s2635 = scalar_lea.vmem [#allocation5], %s2634
        // Predicated region
        $region57: #{tpu_custom_call.1} parent=51 // pred_check
          %p2636 = pneg %p216
        $region58: #{tpu_custom_call.1} parent=51 // pred_check_branch
          %2638 = sbr.rel (%p2636) target = $region60
        $region59: #{tpu_custom_call.1} parent=51 // pred_region
          %s2640 = ssub.s32 256, 256
          %2641 = vsyncadd %s2632, %s2640
          %s2642 = smul.addr %s25, 2
          %s2643 = smul.addr %s2642, 128
          %s2644 = scalar_lea.hbm %s8, %s2643
          %s2646 = sshll.u32 %s2635, 4
          %s2647 = int_to_ptr.vmem [resolvable:$true] %s2646
          %2649 = dma.vmem_to_hbm [thread:$0]  %s2647, 256, %s2644, %s2632
        $region60: #{tpu_custom_call.1} parent=51 // pred_fallthru
          _
      $region52: #{tpu_custom_call.1} parent=5 // pred_fallthru
        _
      %p2650 = scmp.le.s32.totalorder 2, %s20
      // Predicated region
      $region61: #{tpu_custom_call.1} parent=5 // pred_check
        %p2651 = pneg %p2650
      $region62: #{tpu_custom_call.1} parent=5 // pred_check_branch
        %2653 = sbr.rel (%p2651) target = $region64
      $region63: #{tpu_custom_call.1} parent=5 // pred_region
        %s2654 = ssub.s32 %s20, 2
        // Predicated region
        $region65: #{tpu_custom_call.1} parent=63 // pred_check
          %p2655 = pneg %p222
        $region66: #{tpu_custom_call.1} parent=63 // pred_check_branch
          %2657 = sbr.rel (%p2655) target = $region68
        $region67: #{tpu_custom_call.1} parent=63 // pred_region
          %s2658 = sand.u32 %s207, 1
          %s2659 = scalar_lea.sflag [#allocation4], %s2658
          %s2660 = sand.u32 %s207, 1
          %s2661 = smul.addr %s2660, 16
          %s2662 = scalar_lea.vmem [#allocation5], %s2661
          %2663 = dma.done %s2659, 256
        $region68: #{tpu_custom_call.1} parent=63 // pred_fallthru
          _
      $region64: #{tpu_custom_call.1} parent=5 // pred_fallthru
        _
    $region6: #{tpu_custom_call.1} parent=1 // loop_footer
      %s24 = sadd.s32 1, %s20
    $region7: #{tpu_custom_call.1} parent=1 // loop_footer_branch
      %19 = sbr.rel target = $region3
    $region8: #{tpu_custom_call.1} parent=1 // loop_exit
      _
    %2664 = vsyncpa [#allocation3], 1
    %s2665 = scalar_lea.sflag [#allocation3], 1
    %2666 = vsyncpa %s2665, 1
    %2667 = vsyncpa [#allocation4], 1
    %s2668 = scalar_lea.sflag [#allocation4], 1
    %2669 = vsyncpa %s2668, 1

</llo_original>
